<compile_context>
chip_gen: v5e
topology: v5e:2x2
jax: 0.10.0
libtpu: 0.0.40
codegen_flags: <defaults>
</compile_context>

<pallas_src>
import jax
import jax.numpy as jnp
import numpy as np
from jax import lax
from jax.experimental import pallas as pl
from jax.experimental.pallas import tpu as pltpu


def _lstm_model_kernel(x_ref, xlast_ref, len_ref,
                       wih_f_ref, whh_f_ref, bf_ref,
                       wih_b_ref, bb_ref,
                       w0f_ref, w0b_ref, b0_ref, w1_ref, b1_ref, w2_ref, b2_ref,
                       out_ref, xproj_ref):
    TB, _E = x_ref.shape                 # x is t-major: row t*Bp + b == x[b, t]
    Bp = len_ref.shape[0]                # sublane-padded batch (multiple of 8)
    T = TB // Bp
    Hp = whh_f_ref.shape[0]              # lane-padded hidden (multiple of 128)

    lengths = len_ref[...]               # (Bp, 1) int32

    # Hoisted forward input projection: one big MXU matmul (bf16 operands,
    # f32 accumulation), bias folded in, written once to VMEM scratch.
    xproj_ref[...] = (jnp.dot(x_ref[...], wih_f_ref[...],
                              preferred_element_type=jnp.float32)
                      + bf_ref[...])                           # (T*Bp, 4*Hp)

    whh_f = whh_f_ref[...]               # (Hp, 4*Hp) bf16

    def step(t, carry):
        h, c = carry
        row = pl.multiple_of(t * Bp, Bp)
        xp_t = xproj_ref[pl.ds(row, Bp), :]                    # (Bp, 4*Hp) f32
        gates = xp_t + jnp.dot(h.astype(jnp.bfloat16), whh_f,
                               preferred_element_type=jnp.float32)
        # Each gate occupies its own 128-lane block -> full-vreg slices.
        i = jax.nn.sigmoid(gates[:, 0:Hp])
        f = jax.nn.sigmoid(gates[:, Hp:2 * Hp])
        g = jnp.tanh(gates[:, 2 * Hp:3 * Hp])                  # tanh only on g
        o = jax.nn.sigmoid(gates[:, 3 * Hp:4 * Hp])
        c_new = f * c + i * g
        h_new = o * jnp.tanh(c_new)
        # Packed-sequence semantics: state advances only while t < length, so
        # the carried h equals the forward output gathered at (length - 1).
        upd = t < lengths                                      # (Bp, 1) bool
        h = jnp.where(upd, h_new, h)
        c = jnp.where(upd, c_new, c)
        return h, c

    h0 = jnp.zeros((Bp, Hp), jnp.float32)
    c0 = jnp.zeros((Bp, Hp), jnp.float32)
    h_f, _ = lax.fori_loop(0, T, step, (h0, c0), unroll=True)

    # Backward direction: single cell step on the last valid token with zero
    # state (h0 == 0 kills the W_hh_bwd term, c0 == 0 kills f*c).
    gb = (jnp.dot(xlast_ref[...], wih_b_ref[...],
                  preferred_element_type=jnp.float32) + bb_ref[...])
    ib = jax.nn.sigmoid(gb[:, 0:Hp])
    gg = jnp.tanh(gb[:, 2 * Hp:3 * Hp])
    ob = jax.nn.sigmoid(gb[:, 3 * Hp:4 * Hp])
    c_b = ib * gg
    h_b = ob * jnp.tanh(c_b)

    # MLP head: concat(h_fwd, h_bwd) @ W0 expressed as two matmuls with
    # pre-split weights (no lane concat, no in-kernel sublane slice).
    # self.relu (a Sigmoid) is never applied in forward(); dropout == identity.
    out = (jnp.dot(h_f, w0f_ref[...], preferred_element_type=jnp.float32)
           + jnp.dot(h_b, w0b_ref[...], preferred_element_type=jnp.float32)
           + b0_ref[...])
    out = jnp.dot(out, w1_ref[...], preferred_element_type=jnp.float32) + b1_ref[...]
    out = jnp.dot(out, w2_ref[...], preferred_element_type=jnp.float32) + b2_ref[...]
    out_ref[...] = out                                          # lane-dense store


def lstm_model_forward(tokens, params, n_labels):
    """XLA wrapper: embedding gather + padding/layout prep, then one gridless kernel."""
    (emb, wih_f, whh_f, bf, wih_b, whh_b, bb,
     w0, b0, w1, b1, w2, b2) = params
    del whh_b  # backward initial hidden is 0, so its W_hh term is identically 0

    B, T = tokens.shape
    E = emb.shape[1]
    H = whh_f.shape[0]
    Hp = ((H + 127) // 128) * 128        # each gate padded to a full lane block
    Bp = ((B + 7) // 8) * 8              # batch padded to full sublanes
    NLp = ((n_labels + 127) // 128) * 128  # lane-dense output width

    # Pad batch (pad token id 0 -> padded rows get length 1; sliced off later).
    tokens_p = jnp.zeros((Bp, T), tokens.dtype).at[:B].set(tokens)

    # seq lengths (mirrors the python loop in LSTM_MODEL.forward when
    # seq_lenghts is None): last nonzero index + 1, minimum 1.
    pos = jnp.arange(T, dtype=jnp.int32)[None, :]
    lengths = jnp.maximum(
        jnp.max(jnp.where(tokens_p != 0, pos + 1, 0), axis=1, keepdims=True), 1
    ).astype(jnp.int32)                                          # (Bp, 1)

    # Embedding gather, t-major directly (row t*Bp + b), bf16 matmul operands.
    flat_ids = jnp.transpose(tokens_p, (1, 0)).reshape(-1)       # (T*Bp,)
    x_flat = jnp.take(emb, flat_ids, axis=0).astype(jnp.bfloat16)  # (T*Bp, E)

    # Last valid token per row, for the single backward-direction cell step.
    last_tok = jnp.take_along_axis(tokens_p, lengths - 1, axis=1)[:, 0]  # (Bp,)
    x_last = jnp.take(emb, last_tok, axis=0).astype(jnp.bfloat16)        # (Bp, E)

    def pad_gates(w):
        # (rows, 4H) -> (rows, 4*Hp): each gate in its own Hp-lane block, zero pad.
        rows = w.shape[0]
        w4 = w.reshape(rows, 4, H)
        return jnp.zeros((rows, 4, Hp), w.dtype).at[:, :, :H].set(w4).reshape(rows, 4 * Hp)

    wih_f_p = pad_gates(wih_f).astype(jnp.bfloat16)              # (E, 4*Hp)
    wih_b_p = pad_gates(wih_b).astype(jnp.bfloat16)              # (E, 4*Hp)
    bf_p = pad_gates(bf)                                         # (1, 4*Hp) f32
    bb_p = pad_gates(bb)                                         # (1, 4*Hp) f32
    whh_f_p = (jnp.zeros((Hp, 4 * Hp), whh_f.dtype)
               .at[:H].set(pad_gates(whh_f))
               .astype(jnp.bfloat16))                            # (Hp, 4*Hp)

    # MLP head: pre-split w0 into fwd/bwd halves with rows padded H -> Hp;
    # final layer padded to a 128-lane output (sliced back below).
    hid0 = w0.shape[1]
    w0f = jnp.zeros((Hp, hid0), w0.dtype).at[:H].set(w0[:H])
    w0b = jnp.zeros((Hp, hid0), w0.dtype).at[:H].set(w0[H:2 * H])
    w2p = jnp.zeros((w2.shape[0], NLp), w2.dtype).at[:, :n_labels].set(w2)
    b2p = jnp.zeros((1, NLp), b2.dtype).at[:, :n_labels].set(b2)

    args = (x_flat, x_last, lengths,
            wih_f_p, whh_f_p, bf_p, wih_b_p, bb_p,
            w0f, w0b, b0, w1, b1, w2p, b2p)
    vmem = pltpu.MemorySpace.VMEM
    out = pl.pallas_call(
        _lstm_model_kernel,
        out_shape=jax.ShapeDtypeStruct((Bp, NLp), jnp.float32),
        in_specs=[pl.BlockSpec(memory_space=vmem) for _ in args],
        out_specs=pl.BlockSpec(memory_space=vmem),
        scratch_shapes=[pltpu.VMEM((T * Bp, 4 * Hp), jnp.float32)],
        compiler_params=pltpu.CompilerParams(vmem_limit_bytes=32 * 1024 * 1024),
    )(*args)
    return out[:B, :n_labels]


def reference_forward(tokens, params):
    """Pure numpy reference implementing the same packed-biLSTM + MLP semantics."""
    (emb, wih_f, whh_f, bf, wih_b, whh_b, bb, w0, b0, w1, b1, w2, b2) = [
        np.asarray(p, dtype=np.float64) if np.asarray(p).dtype != np.int32 else np.asarray(p)
        for p in params]
    tokens = np.asarray(tokens)
    B, T = tokens.shape
    H = whh_f.shape[0]

    def cell(x, h, c, wih, whh, bias):
        g = x @ wih + h @ whh + bias[0]
        i_ = 1.0 / (1.0 + np.exp(-g[0:H]))
        f_ = 1.0 / (1.0 + np.exp(-g[H:2 * H]))
        gg = np.tanh(g[2 * H:3 * H])
        o_ = 1.0 / (1.0 + np.exp(-g[3 * H:4 * H]))
        c = f_ * c + i_ * gg
        h = o_ * np.tanh(c)
        return h, c

    rows = []
    for b in range(B):
        length = 1
        for i in range(T - 1, -1, -1):
            if tokens[b, i] != 0:
                length = i + 1
                break
        x_seq = emb[tokens[b, :length]]
        h = np.zeros(H); c = np.zeros(H)
        for t in range(length):
            h, c = cell(x_seq[t], h, c, wih_f, whh_f, bf)
        hb, _ = cell(x_seq[length - 1], np.zeros(H), np.zeros(H), wih_b, whh_b, bb)
        feat = np.concatenate([h, hb])
        o = feat @ w0 + b0[0]
        o = o @ w1 + b1[0]
        o = o @ w2 + b2[0]
        rows.append(o)
    return np.stack(rows)


if __name__ == "__main__":
    # Small, args-consistent shapes:
    B, T = 2, 8                 # batch, sequence length
    V, E = 64, 32               # vocab size (len(tokenizer)), embedding_dim
    H = 32                      # hidden_lstm (4H = 128 gate lanes before padding)
    HIDDEN_SIZES = (64, 32)     # args.hidden_sizes
    N_LABELS = 4                # n_labels

    key = jax.random.PRNGKey(0)
    ks = list(jax.random.split(key, 16))

    def xavier_uniform(k, shape, fan_in, fan_out):
        bound = float(np.sqrt(6.0 / (fan_in + fan_out)))
        return jax.random.uniform(k, shape, jnp.float32, -bound, bound)

    def xavier_normal(k, shape, fan_in, fan_out):
        std = float(np.sqrt(2.0 / (fan_in + fan_out)))
        return std * jax.random.normal(k, shape, jnp.float32)

    # Tokens (0 = pad); make sequence 0 shorter to exercise the length logic.
    tokens = jax.random.randint(ks[0], (B, T), 1, V, dtype=jnp.int32)
    tokens = tokens.at[0, 5:].set(0)

    # Embedding table (stands in for the glove-initialized embedding matrix).
    emb = 0.1 * jax.random.normal(ks[1], (V, E), jnp.float32)

    # LSTM weights (pre-transposed to (in, 4H)), xavier_uniform as in __init__,
    # biases zero (init.constant_); LSTM biases pre-summed (b_ih + b_hh).
    wih_f = xavier_uniform(ks[2], (E, 4 * H), E, 4 * H)
    whh_f = xavier_uniform(ks[3], (H, 4 * H), H, 4 * H)
    bf = jnp.zeros((1, 4 * H), jnp.float32)
    wih_b = xavier_uniform(ks[4], (E, 4 * H), E, 4 * H)
    whh_b = xavier_uniform(ks[5], (H, 4 * H), H, 4 * H)
    bb = jnp.zeros((1, 4 * H), jnp.float32)

    # MLP head, xavier_normal weights, biases filled with 0.01 (init_weights).
    w0 = xavier_normal(ks[6], (2 * H, HIDDEN_SIZES[0]), 2 * H, HIDDEN_SIZES[0])
    b0 = jnp.full((1, HIDDEN_SIZES[0]), 0.01, jnp.float32)
    w1 = xavier_normal(ks[7], (HIDDEN_SIZES[0], HIDDEN_SIZES[1]),
                       HIDDEN_SIZES[0], HIDDEN_SIZES[1])
    b1 = jnp.full((1, HIDDEN_SIZES[1]), 0.01, jnp.float32)
    w2 = xavier_normal(ks[8], (HIDDEN_SIZES[1], N_LABELS), HIDDEN_SIZES[1], N_LABELS)
    b2 = jnp.full((1, N_LABELS), 0.01, jnp.float32)

    params = (emb, wih_f, whh_f, bf, wih_b, whh_b, bb, w0, b0, w1, b1, w2, b2)

    forward = jax.jit(lstm_model_forward, static_argnums=(2,))
    out = forward(tokens, params, N_LABELS)
    out = jax.block_until_ready(out)

    ref = reference_forward(tokens, params)
    # bf16 matmul operands accumulate mild rounding over the T-step recurrence.
    np.testing.assert_allclose(np.asarray(out), ref, atol=2e-2, rtol=2e-2)

    print("KERNEL_OK")
</pallas_src>

<mosaic_0001>
module attributes {stable_mosaic.version = 11 : i64} {
  func.func @_lstm_model_kernel(%arg0: memref<64x32xbf16, #tpu.memory_space<vmem>>, %arg1: memref<8x32xbf16, #tpu.memory_space<vmem>>, %arg2: memref<8x1xi32, #tpu.memory_space<vmem>>, %arg3: memref<32x512xbf16, #tpu.memory_space<vmem>>, %arg4: memref<128x512xbf16, #tpu.memory_space<vmem>>, %arg5: memref<1x512xf32, #tpu.memory_space<vmem>>, %arg6: memref<32x512xbf16, #tpu.memory_space<vmem>>, %arg7: memref<1x512xf32, #tpu.memory_space<vmem>>, %arg8: memref<128x64xf32, #tpu.memory_space<vmem>>, %arg9: memref<128x64xf32, #tpu.memory_space<vmem>>, %arg10: memref<1x64xf32, #tpu.memory_space<vmem>>, %arg11: memref<64x32xf32, #tpu.memory_space<vmem>>, %arg12: memref<1x32xf32, #tpu.memory_space<vmem>>, %arg13: memref<32x128xf32, #tpu.memory_space<vmem>>, %arg14: memref<1x128xf32, #tpu.memory_space<vmem>>, %arg15: memref<8x128xf32, #tpu.memory_space<vmem>>, %arg16: memref<64x512xf32, #tpu.memory_space<vmem>>) attributes {dimension_semantics = [], scalar_prefetch = 0 : i64, scratch_operands = 1 : i64, tpu.core_type = #tpu.core_type<tc>} {
    %c0 = arith.constant 0 : index
    %c0_0 = arith.constant 0 : index
    %0 = vector.load %arg2[%c0, %c0_0] : memref<8x1xi32, #tpu.memory_space<vmem>>, vector<8x1xi32>
    %c0_1 = arith.constant 0 : index
    %c0_2 = arith.constant 0 : index
    %1 = vector.load %arg0[%c0_1, %c0_2] : memref<64x32xbf16, #tpu.memory_space<vmem>>, vector<64x32xbf16>
    %c0_3 = arith.constant 0 : index
    %c0_4 = arith.constant 0 : index
    %2 = vector.load %arg3[%c0_3, %c0_4] : memref<32x512xbf16, #tpu.memory_space<vmem>>, vector<32x512xbf16>
    %cst = arith.constant dense<0.000000e+00> : vector<64x512xf32>
    %3 = tpu.matmul %1, %2, %cst {dimension_numbers = #tpu.dot_dimension_numbers<[1], [0], [0], [1], [0, 0, 1, 1], [], []>} : vector<64x32xbf16>, vector<32x512xbf16>, vector<64x512xf32> -> vector<64x512xf32>
    %c0_5 = arith.constant 0 : index
    %c0_6 = arith.constant 0 : index
    %4 = vector.load %arg5[%c0_5, %c0_6] : memref<1x512xf32, #tpu.memory_space<vmem>>, vector<1x512xf32>
    %5 = vector.broadcast %4 : vector<1x512xf32> to vector<64x512xf32>
    %6 = arith.addf %3, %5 : vector<64x512xf32>
    %c0_7 = arith.constant 0 : index
    %c0_8 = arith.constant 0 : index
    %7 = vector.load %arg16[%c0_7, %c0_8] : memref<64x512xf32, #tpu.memory_space<vmem>>, vector<64x512xf32>
    tpu.vector_store %arg16[%c0_7, %c0_8], %6 {strides = array<i32>} : memref<64x512xf32, #tpu.memory_space<vmem>>, vector<64x512xf32>,
    %c0_9 = arith.constant 0 : index
    %c0_10 = arith.constant 0 : index
    %8 = vector.load %arg4[%c0_9, %c0_10] : memref<128x512xbf16, #tpu.memory_space<vmem>>, vector<128x512xbf16>
    %cst_11 = arith.constant 0.000000e+00 : f32
    %9 = vector.broadcast %cst_11 : f32 to vector<8x128xf32>
    %cst_12 = arith.constant 0.000000e+00 : f32
    %10 = vector.broadcast %cst_12 : f32 to vector<8x128xf32>
    %c0_i32 = arith.constant 0 : i32
    %c8_i32 = arith.constant 8 : i32
    %11 = arith.muli %c0_i32, %c8_i32 : i32
    %12 = tpu.assume_multiple %11, 8 : i32
    %13 = arith.index_cast %12 : i32 to index
    %c0_13 = arith.constant 0 : index
    %14 = vector.load %arg16[%13, %c0_13] : memref<64x512xf32, #tpu.memory_space<vmem>>, vector<8x512xf32>
    %15 = arith.truncf %9 : vector<8x128xf32> to vector<8x128xbf16>
    %cst_14 = arith.constant dense<0.000000e+00> : vector<8x512xf32>
    %16 = tpu.matmul %15, %8, %cst_14 {dimension_numbers = #tpu.dot_dimension_numbers<[1], [0], [0], [1], [0, 0, 1, 1], [], []>} : vector<8x128xbf16>, vector<128x512xbf16>, vector<8x512xf32> -> vector<8x512xf32>
    %17 = arith.addf %14, %16 : vector<8x512xf32>
    %18 = vector.extract_strided_slice %17 {offsets = [0, 0], sizes = [8, 128], strides = [1, 1]} : vector<8x512xf32> to vector<8x128xf32>
    %19 = arith.negf %18 : vector<8x128xf32>
    %20 = math.exp %19 : vector<8x128xf32>
    %cst_15 = arith.constant 1.000000e+00 : f32
    %21 = vector.broadcast %cst_15 : f32 to vector<8x128xf32>
    %22 = arith.addf %21, %20 : vector<8x128xf32>
    %23 = arith.divf %21, %22 : vector<8x128xf32>
    %24 = vector.extract_strided_slice %17 {offsets = [0, 128], sizes = [8, 128], strides = [1, 1]} : vector<8x512xf32> to vector<8x128xf32>
    %25 = arith.negf %24 : vector<8x128xf32>
    %26 = math.exp %25 : vector<8x128xf32>
    %cst_16 = arith.constant 1.000000e+00 : f32
    %27 = vector.broadcast %cst_16 : f32 to vector<8x128xf32>
    %28 = arith.addf %27, %26 : vector<8x128xf32>
    %29 = arith.divf %27, %28 : vector<8x128xf32>
    %30 = vector.extract_strided_slice %17 {offsets = [0, 256], sizes = [8, 128], strides = [1, 1]} : vector<8x512xf32> to vector<8x128xf32>
    %31 = math.tanh %30 : vector<8x128xf32>
    %32 = vector.extract_strided_slice %17 {offsets = [0, 384], sizes = [8, 128], strides = [1, 1]} : vector<8x512xf32> to vector<8x128xf32>
    %33 = arith.negf %32 : vector<8x128xf32>
    %34 = math.exp %33 : vector<8x128xf32>
    %cst_17 = arith.constant 1.000000e+00 : f32
    %35 = vector.broadcast %cst_17 : f32 to vector<8x128xf32>
    %36 = arith.addf %35, %34 : vector<8x128xf32>
    %37 = arith.divf %35, %36 : vector<8x128xf32>
    %38 = arith.mulf %29, %10 : vector<8x128xf32>
    %39 = arith.mulf %23, %31 : vector<8x128xf32>
    %40 = arith.addf %38, %39 : vector<8x128xf32>
    %41 = math.tanh %40 : vector<8x128xf32>
    %42 = arith.mulf %37, %41 : vector<8x128xf32>
    %43 = vector.broadcast %c0_i32 : i32 to vector<8x1xi32>
    %44 = arith.cmpi slt, %43, %0 : vector<8x1xi32>
    %45 = vector.shape_cast %44 : vector<8x1xi1> to vector<8x1xi1>
    %46 = vector.broadcast %45 : vector<8x1xi1> to vector<8x128xi1>
    %47 = arith.select %46, %42, %9 : vector<8x128xi1>, vector<8x128xf32>
    %48 = vector.shape_cast %44 : vector<8x1xi1> to vector<8x1xi1>
    %49 = vector.broadcast %48 : vector<8x1xi1> to vector<8x128xi1>
    %50 = arith.select %49, %40, %10 : vector<8x128xi1>, vector<8x128xf32>
    %c1_i32 = arith.constant 1 : i32
    %c8_i32_18 = arith.constant 8 : i32
    %51 = arith.muli %c1_i32, %c8_i32_18 : i32
    %52 = tpu.assume_multiple %51, 8 : i32
    %53 = arith.index_cast %52 : i32 to index
    %c0_19 = arith.constant 0 : index
    %54 = vector.load %arg16[%53, %c0_19] : memref<64x512xf32, #tpu.memory_space<vmem>>, vector<8x512xf32>
    %55 = arith.truncf %47 : vector<8x128xf32> to vector<8x128xbf16>
    %cst_20 = arith.constant dense<0.000000e+00> : vector<8x512xf32>
    %56 = tpu.matmul %55, %8, %cst_20 {dimension_numbers = #tpu.dot_dimension_numbers<[1], [0], [0], [1], [0, 0, 1, 1], [], []>} : vector<8x128xbf16>, vector<128x512xbf16>, vector<8x512xf32> -> vector<8x512xf32>
    %57 = arith.addf %54, %56 : vector<8x512xf32>
    %58 = vector.extract_strided_slice %57 {offsets = [0, 0], sizes = [8, 128], strides = [1, 1]} : vector<8x512xf32> to vector<8x128xf32>
    %59 = arith.negf %58 : vector<8x128xf32>
    %60 = math.exp %59 : vector<8x128xf32>
    %cst_21 = arith.constant 1.000000e+00 : f32
    %61 = vector.broadcast %cst_21 : f32 to vector<8x128xf32>
    %62 = arith.addf %61, %60 : vector<8x128xf32>
    %63 = arith.divf %61, %62 : vector<8x128xf32>
    %64 = vector.extract_strided_slice %57 {offsets = [0, 128], sizes = [8, 128], strides = [1, 1]} : vector<8x512xf32> to vector<8x128xf32>
    %65 = arith.negf %64 : vector<8x128xf32>
    %66 = math.exp %65 : vector<8x128xf32>
    %cst_22 = arith.constant 1.000000e+00 : f32
    %67 = vector.broadcast %cst_22 : f32 to vector<8x128xf32>
    %68 = arith.addf %67, %66 : vector<8x128xf32>
    %69 = arith.divf %67, %68 : vector<8x128xf32>
    %70 = vector.extract_strided_slice %57 {offsets = [0, 256], sizes = [8, 128], strides = [1, 1]} : vector<8x512xf32> to vector<8x128xf32>
    %71 = math.tanh %70 : vector<8x128xf32>
    %72 = vector.extract_strided_slice %57 {offsets = [0, 384], sizes = [8, 128], strides = [1, 1]} : vector<8x512xf32> to vector<8x128xf32>
    %73 = arith.negf %72 : vector<8x128xf32>
    %74 = math.exp %73 : vector<8x128xf32>
    %cst_23 = arith.constant 1.000000e+00 : f32
    %75 = vector.broadcast %cst_23 : f32 to vector<8x128xf32>
    %76 = arith.addf %75, %74 : vector<8x128xf32>
    %77 = arith.divf %75, %76 : vector<8x128xf32>
    %78 = arith.mulf %69, %50 : vector<8x128xf32>
    %79 = arith.mulf %63, %71 : vector<8x128xf32>
    %80 = arith.addf %78, %79 : vector<8x128xf32>
    %81 = math.tanh %80 : vector<8x128xf32>
    %82 = arith.mulf %77, %81 : vector<8x128xf32>
    %83 = vector.broadcast %c1_i32 : i32 to vector<8x1xi32>
    %84 = arith.cmpi slt, %83, %0 : vector<8x1xi32>
    %85 = vector.shape_cast %84 : vector<8x1xi1> to vector<8x1xi1>
    %86 = vector.broadcast %85 : vector<8x1xi1> to vector<8x128xi1>
    %87 = arith.select %86, %82, %47 : vector<8x128xi1>, vector<8x128xf32>
    %88 = vector.shape_cast %84 : vector<8x1xi1> to vector<8x1xi1>
    %89 = vector.broadcast %88 : vector<8x1xi1> to vector<8x128xi1>
    %90 = arith.select %89, %80, %50 : vector<8x128xi1>, vector<8x128xf32>
    %c2_i32 = arith.constant 2 : i32
    %c8_i32_24 = arith.constant 8 : i32
    %91 = arith.muli %c2_i32, %c8_i32_24 : i32
    %92 = tpu.assume_multiple %91, 8 : i32
    %93 = arith.index_cast %92 : i32 to index
    %c0_25 = arith.constant 0 : index
    %94 = vector.load %arg16[%93, %c0_25] : memref<64x512xf32, #tpu.memory_space<vmem>>, vector<8x512xf32>
    %95 = arith.truncf %87 : vector<8x128xf32> to vector<8x128xbf16>
    %cst_26 = arith.constant dense<0.000000e+00> : vector<8x512xf32>
    %96 = tpu.matmul %95, %8, %cst_26 {dimension_numbers = #tpu.dot_dimension_numbers<[1], [0], [0], [1], [0, 0, 1, 1], [], []>} : vector<8x128xbf16>, vector<128x512xbf16>, vector<8x512xf32> -> vector<8x512xf32>
    %97 = arith.addf %94, %96 : vector<8x512xf32>
    %98 = vector.extract_strided_slice %97 {offsets = [0, 0], sizes = [8, 128], strides = [1, 1]} : vector<8x512xf32> to vector<8x128xf32>
    %99 = arith.negf %98 : vector<8x128xf32>
    %100 = math.exp %99 : vector<8x128xf32>
    %cst_27 = arith.constant 1.000000e+00 : f32
    %101 = vector.broadcast %cst_27 : f32 to vector<8x128xf32>
    %102 = arith.addf %101, %100 : vector<8x128xf32>
    %103 = arith.divf %101, %102 : vector<8x128xf32>
    %104 = vector.extract_strided_slice %97 {offsets = [0, 128], sizes = [8, 128], strides = [1, 1]} : vector<8x512xf32> to vector<8x128xf32>
    %105 = arith.negf %104 : vector<8x128xf32>
    %106 = math.exp %105 : vector<8x128xf32>
    %cst_28 = arith.constant 1.000000e+00 : f32
    %107 = vector.broadcast %cst_28 : f32 to vector<8x128xf32>
    %108 = arith.addf %107, %106 : vector<8x128xf32>
    %109 = arith.divf %107, %108 : vector<8x128xf32>
    %110 = vector.extract_strided_slice %97 {offsets = [0, 256], sizes = [8, 128], strides = [1, 1]} : vector<8x512xf32> to vector<8x128xf32>
    %111 = math.tanh %110 : vector<8x128xf32>
    %112 = vector.extract_strided_slice %97 {offsets = [0, 384], sizes = [8, 128], strides = [1, 1]} : vector<8x512xf32> to vector<8x128xf32>
    %113 = arith.negf %112 : vector<8x128xf32>
    %114 = math.exp %113 : vector<8x128xf32>
    %cst_29 = arith.constant 1.000000e+00 : f32
    %115 = vector.broadcast %cst_29 : f32 to vector<8x128xf32>
    %116 = arith.addf %115, %114 : vector<8x128xf32>
    %117 = arith.divf %115, %116 : vector<8x128xf32>
    %118 = arith.mulf %109, %90 : vector<8x128xf32>
    %119 = arith.mulf %103, %111 : vector<8x128xf32>
    %120 = arith.addf %118, %119 : vector<8x128xf32>
    %121 = math.tanh %120 : vector<8x128xf32>
    %122 = arith.mulf %117, %121 : vector<8x128xf32>
    %123 = vector.broadcast %c2_i32 : i32 to vector<8x1xi32>
    %124 = arith.cmpi slt, %123, %0 : vector<8x1xi32>
    %125 = vector.shape_cast %124 : vector<8x1xi1> to vector<8x1xi1>
    %126 = vector.broadcast %125 : vector<8x1xi1> to vector<8x128xi1>
    %127 = arith.select %126, %122, %87 : vector<8x128xi1>, vector<8x128xf32>
    %128 = vector.shape_cast %124 : vector<8x1xi1> to vector<8x1xi1>
    %129 = vector.broadcast %128 : vector<8x1xi1> to vector<8x128xi1>
    %130 = arith.select %129, %120, %90 : vector<8x128xi1>, vector<8x128xf32>
    %c3_i32 = arith.constant 3 : i32
    %c8_i32_30 = arith.constant 8 : i32
    %131 = arith.muli %c3_i32, %c8_i32_30 : i32
    %132 = tpu.assume_multiple %131, 8 : i32
    %133 = arith.index_cast %132 : i32 to index
    %c0_31 = arith.constant 0 : index
    %134 = vector.load %arg16[%133, %c0_31] : memref<64x512xf32, #tpu.memory_space<vmem>>, vector<8x512xf32>
    %135 = arith.truncf %127 : vector<8x128xf32> to vector<8x128xbf16>
    %cst_32 = arith.constant dense<0.000000e+00> : vector<8x512xf32>
    %136 = tpu.matmul %135, %8, %cst_32 {dimension_numbers = #tpu.dot_dimension_numbers<[1], [0], [0], [1], [0, 0, 1, 1], [], []>} : vector<8x128xbf16>, vector<128x512xbf16>, vector<8x512xf32> -> vector<8x512xf32>
    %137 = arith.addf %134, %136 : vector<8x512xf32>
    %138 = vector.extract_strided_slice %137 {offsets = [0, 0], sizes = [8, 128], strides = [1, 1]} : vector<8x512xf32> to vector<8x128xf32>
    %139 = arith.negf %138 : vector<8x128xf32>
    %140 = math.exp %139 : vector<8x128xf32>
    %cst_33 = arith.constant 1.000000e+00 : f32
    %141 = vector.broadcast %cst_33 : f32 to vector<8x128xf32>
    %142 = arith.addf %141, %140 : vector<8x128xf32>
    %143 = arith.divf %141, %142 : vector<8x128xf32>
    %144 = vector.extract_strided_slice %137 {offsets = [0, 128], sizes = [8, 128], strides = [1, 1]} : vector<8x512xf32> to vector<8x128xf32>
    %145 = arith.negf %144 : vector<8x128xf32>
    %146 = math.exp %145 : vector<8x128xf32>
    %cst_34 = arith.constant 1.000000e+00 : f32
    %147 = vector.broadcast %cst_34 : f32 to vector<8x128xf32>
    %148 = arith.addf %147, %146 : vector<8x128xf32>
    %149 = arith.divf %147, %148 : vector<8x128xf32>
    %150 = vector.extract_strided_slice %137 {offsets = [0, 256], sizes = [8, 128], strides = [1, 1]} : vector<8x512xf32> to vector<8x128xf32>
    %151 = math.tanh %150 : vector<8x128xf32>
    %152 = vector.extract_strided_slice %137 {offsets = [0, 384], sizes = [8, 128], strides = [1, 1]} : vector<8x512xf32> to vector<8x128xf32>
    %153 = arith.negf %152 : vector<8x128xf32>
    %154 = math.exp %153 : vector<8x128xf32>
    %cst_35 = arith.constant 1.000000e+00 : f32
    %155 = vector.broadcast %cst_35 : f32 to vector<8x128xf32>
    %156 = arith.addf %155, %154 : vector<8x128xf32>
    %157 = arith.divf %155, %156 : vector<8x128xf32>
    %158 = arith.mulf %149, %130 : vector<8x128xf32>
    %159 = arith.mulf %143, %151 : vector<8x128xf32>
    %160 = arith.addf %158, %159 : vector<8x128xf32>
    %161 = math.tanh %160 : vector<8x128xf32>
    %162 = arith.mulf %157, %161 : vector<8x128xf32>
    %163 = vector.broadcast %c3_i32 : i32 to vector<8x1xi32>
    %164 = arith.cmpi slt, %163, %0 : vector<8x1xi32>
    %165 = vector.shape_cast %164 : vector<8x1xi1> to vector<8x1xi1>
    %166 = vector.broadcast %165 : vector<8x1xi1> to vector<8x128xi1>
    %167 = arith.select %166, %162, %127 : vector<8x128xi1>, vector<8x128xf32>
    %168 = vector.shape_cast %164 : vector<8x1xi1> to vector<8x1xi1>
    %169 = vector.broadcast %168 : vector<8x1xi1> to vector<8x128xi1>
    %170 = arith.select %169, %160, %130 : vector<8x128xi1>, vector<8x128xf32>
    %c4_i32 = arith.constant 4 : i32
    %c8_i32_36 = arith.constant 8 : i32
    %171 = arith.muli %c4_i32, %c8_i32_36 : i32
    %172 = tpu.assume_multiple %171, 8 : i32
    %173 = arith.index_cast %172 : i32 to index
    %c0_37 = arith.constant 0 : index
    %174 = vector.load %arg16[%173, %c0_37] : memref<64x512xf32, #tpu.memory_space<vmem>>, vector<8x512xf32>
    %175 = arith.truncf %167 : vector<8x128xf32> to vector<8x128xbf16>
    %cst_38 = arith.constant dense<0.000000e+00> : vector<8x512xf32>
    %176 = tpu.matmul %175, %8, %cst_38 {dimension_numbers = #tpu.dot_dimension_numbers<[1], [0], [0], [1], [0, 0, 1, 1], [], []>} : vector<8x128xbf16>, vector<128x512xbf16>, vector<8x512xf32> -> vector<8x512xf32>
    %177 = arith.addf %174, %176 : vector<8x512xf32>
    %178 = vector.extract_strided_slice %177 {offsets = [0, 0], sizes = [8, 128], strides = [1, 1]} : vector<8x512xf32> to vector<8x128xf32>
    %179 = arith.negf %178 : vector<8x128xf32>
    %180 = math.exp %179 : vector<8x128xf32>
    %cst_39 = arith.constant 1.000000e+00 : f32
    %181 = vector.broadcast %cst_39 : f32 to vector<8x128xf32>
    %182 = arith.addf %181, %180 : vector<8x128xf32>
    %183 = arith.divf %181, %182 : vector<8x128xf32>
    %184 = vector.extract_strided_slice %177 {offsets = [0, 128], sizes = [8, 128], strides = [1, 1]} : vector<8x512xf32> to vector<8x128xf32>
    %185 = arith.negf %184 : vector<8x128xf32>
    %186 = math.exp %185 : vector<8x128xf32>
    %cst_40 = arith.constant 1.000000e+00 : f32
    %187 = vector.broadcast %cst_40 : f32 to vector<8x128xf32>
    %188 = arith.addf %187, %186 : vector<8x128xf32>
    %189 = arith.divf %187, %188 : vector<8x128xf32>
    %190 = vector.extract_strided_slice %177 {offsets = [0, 256], sizes = [8, 128], strides = [1, 1]} : vector<8x512xf32> to vector<8x128xf32>
    %191 = math.tanh %190 : vector<8x128xf32>
    %192 = vector.extract_strided_slice %177 {offsets = [0, 384], sizes = [8, 128], strides = [1, 1]} : vector<8x512xf32> to vector<8x128xf32>
    %193 = arith.negf %192 : vector<8x128xf32>
    %194 = math.exp %193 : vector<8x128xf32>
    %cst_41 = arith.constant 1.000000e+00 : f32
    %195 = vector.broadcast %cst_41 : f32 to vector<8x128xf32>
    %196 = arith.addf %195, %194 : vector<8x128xf32>
    %197 = arith.divf %195, %196 : vector<8x128xf32>
    %198 = arith.mulf %189, %170 : vector<8x128xf32>
    %199 = arith.mulf %183, %191 : vector<8x128xf32>
    %200 = arith.addf %198, %199 : vector<8x128xf32>
    %201 = math.tanh %200 : vector<8x128xf32>
    %202 = arith.mulf %197, %201 : vector<8x128xf32>
    %203 = vector.broadcast %c4_i32 : i32 to vector<8x1xi32>
    %204 = arith.cmpi slt, %203, %0 : vector<8x1xi32>
    %205 = vector.shape_cast %204 : vector<8x1xi1> to vector<8x1xi1>
    %206 = vector.broadcast %205 : vector<8x1xi1> to vector<8x128xi1>
    %207 = arith.select %206, %202, %167 : vector<8x128xi1>, vector<8x128xf32>
    %208 = vector.shape_cast %204 : vector<8x1xi1> to vector<8x1xi1>
    %209 = vector.broadcast %208 : vector<8x1xi1> to vector<8x128xi1>
    %210 = arith.select %209, %200, %170 : vector<8x128xi1>, vector<8x128xf32>
    %c5_i32 = arith.constant 5 : i32
    %c8_i32_42 = arith.constant 8 : i32
    %211 = arith.muli %c5_i32, %c8_i32_42 : i32
    %212 = tpu.assume_multiple %211, 8 : i32
    %213 = arith.index_cast %212 : i32 to index
    %c0_43 = arith.constant 0 : index
    %214 = vector.load %arg16[%213, %c0_43] : memref<64x512xf32, #tpu.memory_space<vmem>>, vector<8x512xf32>
    %215 = arith.truncf %207 : vector<8x128xf32> to vector<8x128xbf16>
    %cst_44 = arith.constant dense<0.000000e+00> : vector<8x512xf32>
    %216 = tpu.matmul %215, %8, %cst_44 {dimension_numbers = #tpu.dot_dimension_numbers<[1], [0], [0], [1], [0, 0, 1, 1], [], []>} : vector<8x128xbf16>, vector<128x512xbf16>, vector<8x512xf32> -> vector<8x512xf32>
    %217 = arith.addf %214, %216 : vector<8x512xf32>
    %218 = vector.extract_strided_slice %217 {offsets = [0, 0], sizes = [8, 128], strides = [1, 1]} : vector<8x512xf32> to vector<8x128xf32>
    %219 = arith.negf %218 : vector<8x128xf32>
    %220 = math.exp %219 : vector<8x128xf32>
    %cst_45 = arith.constant 1.000000e+00 : f32
    %221 = vector.broadcast %cst_45 : f32 to vector<8x128xf32>
    %222 = arith.addf %221, %220 : vector<8x128xf32>
    %223 = arith.divf %221, %222 : vector<8x128xf32>
    %224 = vector.extract_strided_slice %217 {offsets = [0, 128], sizes = [8, 128], strides = [1, 1]} : vector<8x512xf32> to vector<8x128xf32>
    %225 = arith.negf %224 : vector<8x128xf32>
    %226 = math.exp %225 : vector<8x128xf32>
    %cst_46 = arith.constant 1.000000e+00 : f32
    %227 = vector.broadcast %cst_46 : f32 to vector<8x128xf32>
    %228 = arith.addf %227, %226 : vector<8x128xf32>
    %229 = arith.divf %227, %228 : vector<8x128xf32>
    %230 = vector.extract_strided_slice %217 {offsets = [0, 256], sizes = [8, 128], strides = [1, 1]} : vector<8x512xf32> to vector<8x128xf32>
    %231 = math.tanh %230 : vector<8x128xf32>
    %232 = vector.extract_strided_slice %217 {offsets = [0, 384], sizes = [8, 128], strides = [1, 1]} : vector<8x512xf32> to vector<8x128xf32>
    %233 = arith.negf %232 : vector<8x128xf32>
    %234 = math.exp %233 : vector<8x128xf32>
    %cst_47 = arith.constant 1.000000e+00 : f32
    %235 = vector.broadcast %cst_47 : f32 to vector<8x128xf32>
    %236 = arith.addf %235, %234 : vector<8x128xf32>
    %237 = arith.divf %235, %236 : vector<8x128xf32>
    %238 = arith.mulf %229, %210 : vector<8x128xf32>
    %239 = arith.mulf %223, %231 : vector<8x128xf32>
    %240 = arith.addf %238, %239 : vector<8x128xf32>
    %241 = math.tanh %240 : vector<8x128xf32>
    %242 = arith.mulf %237, %241 : vector<8x128xf32>
    %243 = vector.broadcast %c5_i32 : i32 to vector<8x1xi32>
    %244 = arith.cmpi slt, %243, %0 : vector<8x1xi32>
    %245 = vector.shape_cast %244 : vector<8x1xi1> to vector<8x1xi1>
    %246 = vector.broadcast %245 : vector<8x1xi1> to vector<8x128xi1>
    %247 = arith.select %246, %242, %207 : vector<8x128xi1>, vector<8x128xf32>
    %248 = vector.shape_cast %244 : vector<8x1xi1> to vector<8x1xi1>
    %249 = vector.broadcast %248 : vector<8x1xi1> to vector<8x128xi1>
    %250 = arith.select %249, %240, %210 : vector<8x128xi1>, vector<8x128xf32>
    %c6_i32 = arith.constant 6 : i32
    %c8_i32_48 = arith.constant 8 : i32
    %251 = arith.muli %c6_i32, %c8_i32_48 : i32
    %252 = tpu.assume_multiple %251, 8 : i32
    %253 = arith.index_cast %252 : i32 to index
    %c0_49 = arith.constant 0 : index
    %254 = vector.load %arg16[%253, %c0_49] : memref<64x512xf32, #tpu.memory_space<vmem>>, vector<8x512xf32>
    %255 = arith.truncf %247 : vector<8x128xf32> to vector<8x128xbf16>
    %cst_50 = arith.constant dense<0.000000e+00> : vector<8x512xf32>
    %256 = tpu.matmul %255, %8, %cst_50 {dimension_numbers = #tpu.dot_dimension_numbers<[1], [0], [0], [1], [0, 0, 1, 1], [], []>} : vector<8x128xbf16>, vector<128x512xbf16>, vector<8x512xf32> -> vector<8x512xf32>
    %257 = arith.addf %254, %256 : vector<8x512xf32>
    %258 = vector.extract_strided_slice %257 {offsets = [0, 0], sizes = [8, 128], strides = [1, 1]} : vector<8x512xf32> to vector<8x128xf32>
    %259 = arith.negf %258 : vector<8x128xf32>
    %260 = math.exp %259 : vector<8x128xf32>
    %cst_51 = arith.constant 1.000000e+00 : f32
    %261 = vector.broadcast %cst_51 : f32 to vector<8x128xf32>
    %262 = arith.addf %261, %260 : vector<8x128xf32>
    %263 = arith.divf %261, %262 : vector<8x128xf32>
    %264 = vector.extract_strided_slice %257 {offsets = [0, 128], sizes = [8, 128], strides = [1, 1]} : vector<8x512xf32> to vector<8x128xf32>
    %265 = arith.negf %264 : vector<8x128xf32>
    %266 = math.exp %265 : vector<8x128xf32>
    %cst_52 = arith.constant 1.000000e+00 : f32
    %267 = vector.broadcast %cst_52 : f32 to vector<8x128xf32>
    %268 = arith.addf %267, %266 : vector<8x128xf32>
    %269 = arith.divf %267, %268 : vector<8x128xf32>
    %270 = vector.extract_strided_slice %257 {offsets = [0, 256], sizes = [8, 128], strides = [1, 1]} : vector<8x512xf32> to vector<8x128xf32>
    %271 = math.tanh %270 : vector<8x128xf32>
    %272 = vector.extract_strided_slice %257 {offsets = [0, 384], sizes = [8, 128], strides = [1, 1]} : vector<8x512xf32> to vector<8x128xf32>
    %273 = arith.negf %272 : vector<8x128xf32>
    %274 = math.exp %273 : vector<8x128xf32>
    %cst_53 = arith.constant 1.000000e+00 : f32
    %275 = vector.broadcast %cst_53 : f32 to vector<8x128xf32>
    %276 = arith.addf %275, %274 : vector<8x128xf32>
    %277 = arith.divf %275, %276 : vector<8x128xf32>
    %278 = arith.mulf %269, %250 : vector<8x128xf32>
    %279 = arith.mulf %263, %271 : vector<8x128xf32>
    %280 = arith.addf %278, %279 : vector<8x128xf32>
    %281 = math.tanh %280 : vector<8x128xf32>
    %282 = arith.mulf %277, %281 : vector<8x128xf32>
    %283 = vector.broadcast %c6_i32 : i32 to vector<8x1xi32>
    %284 = arith.cmpi slt, %283, %0 : vector<8x1xi32>
    %285 = vector.shape_cast %284 : vector<8x1xi1> to vector<8x1xi1>
    %286 = vector.broadcast %285 : vector<8x1xi1> to vector<8x128xi1>
    %287 = arith.select %286, %282, %247 : vector<8x128xi1>, vector<8x128xf32>
    %288 = vector.shape_cast %284 : vector<8x1xi1> to vector<8x1xi1>
    %289 = vector.broadcast %288 : vector<8x1xi1> to vector<8x128xi1>
    %290 = arith.select %289, %280, %250 : vector<8x128xi1>, vector<8x128xf32>
    %c7_i32 = arith.constant 7 : i32
    %c8_i32_54 = arith.constant 8 : i32
    %291 = arith.muli %c7_i32, %c8_i32_54 : i32
    %292 = tpu.assume_multiple %291, 8 : i32
    %293 = arith.index_cast %292 : i32 to index
    %c0_55 = arith.constant 0 : index
    %294 = vector.load %arg16[%293, %c0_55] : memref<64x512xf32, #tpu.memory_space<vmem>>, vector<8x512xf32>
    %295 = arith.truncf %287 : vector<8x128xf32> to vector<8x128xbf16>
    %cst_56 = arith.constant dense<0.000000e+00> : vector<8x512xf32>
    %296 = tpu.matmul %295, %8, %cst_56 {dimension_numbers = #tpu.dot_dimension_numbers<[1], [0], [0], [1], [0, 0, 1, 1], [], []>} : vector<8x128xbf16>, vector<128x512xbf16>, vector<8x512xf32> -> vector<8x512xf32>
    %297 = arith.addf %294, %296 : vector<8x512xf32>
    %298 = vector.extract_strided_slice %297 {offsets = [0, 0], sizes = [8, 128], strides = [1, 1]} : vector<8x512xf32> to vector<8x128xf32>
    %299 = arith.negf %298 : vector<8x128xf32>
    %300 = math.exp %299 : vector<8x128xf32>
    %cst_57 = arith.constant 1.000000e+00 : f32
    %301 = vector.broadcast %cst_57 : f32 to vector<8x128xf32>
    %302 = arith.addf %301, %300 : vector<8x128xf32>
    %303 = arith.divf %301, %302 : vector<8x128xf32>
    %304 = vector.extract_strided_slice %297 {offsets = [0, 128], sizes = [8, 128], strides = [1, 1]} : vector<8x512xf32> to vector<8x128xf32>
    %305 = arith.negf %304 : vector<8x128xf32>
    %306 = math.exp %305 : vector<8x128xf32>
    %cst_58 = arith.constant 1.000000e+00 : f32
    %307 = vector.broadcast %cst_58 : f32 to vector<8x128xf32>
    %308 = arith.addf %307, %306 : vector<8x128xf32>
    %309 = arith.divf %307, %308 : vector<8x128xf32>
    %310 = vector.extract_strided_slice %297 {offsets = [0, 256], sizes = [8, 128], strides = [1, 1]} : vector<8x512xf32> to vector<8x128xf32>
    %311 = math.tanh %310 : vector<8x128xf32>
    %312 = vector.extract_strided_slice %297 {offsets = [0, 384], sizes = [8, 128], strides = [1, 1]} : vector<8x512xf32> to vector<8x128xf32>
    %313 = arith.negf %312 : vector<8x128xf32>
    %314 = math.exp %313 : vector<8x128xf32>
    %cst_59 = arith.constant 1.000000e+00 : f32
    %315 = vector.broadcast %cst_59 : f32 to vector<8x128xf32>
    %316 = arith.addf %315, %314 : vector<8x128xf32>
    %317 = arith.divf %315, %316 : vector<8x128xf32>
    %318 = arith.mulf %309, %290 : vector<8x128xf32>
    %319 = arith.mulf %303, %311 : vector<8x128xf32>
    %320 = arith.addf %318, %319 : vector<8x128xf32>
    %321 = math.tanh %320 : vector<8x128xf32>
    %322 = arith.mulf %317, %321 : vector<8x128xf32>
    %323 = vector.broadcast %c7_i32 : i32 to vector<8x1xi32>
    %324 = arith.cmpi slt, %323, %0 : vector<8x1xi32>
    %325 = vector.shape_cast %324 : vector<8x1xi1> to vector<8x1xi1>
    %326 = vector.broadcast %325 : vector<8x1xi1> to vector<8x128xi1>
    %327 = arith.select %326, %322, %287 : vector<8x128xi1>, vector<8x128xf32>
    %328 = vector.shape_cast %324 : vector<8x1xi1> to vector<8x1xi1>
    %329 = vector.broadcast %328 : vector<8x1xi1> to vector<8x128xi1>
    %330 = arith.select %329, %320, %290 : vector<8x128xi1>, vector<8x128xf32>
    %c8_i32_60 = arith.constant 8 : i32
    %c0_61 = arith.constant 0 : index
    %c0_62 = arith.constant 0 : index
    %331 = vector.load %arg1[%c0_61, %c0_62] : memref<8x32xbf16, #tpu.memory_space<vmem>>, vector<8x32xbf16>
    %c0_63 = arith.constant 0 : index
    %c0_64 = arith.constant 0 : index
    %332 = vector.load %arg6[%c0_63, %c0_64] : memref<32x512xbf16, #tpu.memory_space<vmem>>, vector<32x512xbf16>
    %cst_65 = arith.constant dense<0.000000e+00> : vector<8x512xf32>
    %333 = tpu.matmul %331, %332, %cst_65 {dimension_numbers = #tpu.dot_dimension_numbers<[1], [0], [0], [1], [0, 0, 1, 1], [], []>} : vector<8x32xbf16>, vector<32x512xbf16>, vector<8x512xf32> -> vector<8x512xf32>
    %c0_66 = arith.constant 0 : index
    %c0_67 = arith.constant 0 : index
    %334 = vector.load %arg7[%c0_66, %c0_67] : memref<1x512xf32, #tpu.memory_space<vmem>>, vector<1x512xf32>
    %335 = vector.broadcast %334 : vector<1x512xf32> to vector<8x512xf32>
    %336 = arith.addf %333, %335 : vector<8x512xf32>
    %337 = vector.extract_strided_slice %336 {offsets = [0, 0], sizes = [8, 128], strides = [1, 1]} : vector<8x512xf32> to vector<8x128xf32>
    %338 = arith.negf %337 : vector<8x128xf32>
    %339 = math.exp %338 : vector<8x128xf32>
    %cst_68 = arith.constant 1.000000e+00 : f32
    %340 = vector.broadcast %cst_68 : f32 to vector<8x128xf32>
    %341 = arith.addf %340, %339 : vector<8x128xf32>
    %342 = arith.divf %340, %341 : vector<8x128xf32>
    %343 = vector.extract_strided_slice %336 {offsets = [0, 256], sizes = [8, 128], strides = [1, 1]} : vector<8x512xf32> to vector<8x128xf32>
    %344 = math.tanh %343 : vector<8x128xf32>
    %345 = vector.extract_strided_slice %336 {offsets = [0, 384], sizes = [8, 128], strides = [1, 1]} : vector<8x512xf32> to vector<8x128xf32>
    %346 = arith.negf %345 : vector<8x128xf32>
    %347 = math.exp %346 : vector<8x128xf32>
    %cst_69 = arith.constant 1.000000e+00 : f32
    %348 = vector.broadcast %cst_69 : f32 to vector<8x128xf32>
    %349 = arith.addf %348, %347 : vector<8x128xf32>
    %350 = arith.divf %348, %349 : vector<8x128xf32>
    %351 = arith.mulf %342, %344 : vector<8x128xf32>
    %352 = math.tanh %351 : vector<8x128xf32>
    %353 = arith.mulf %350, %352 : vector<8x128xf32>
    %c0_70 = arith.constant 0 : index
    %c0_71 = arith.constant 0 : index
    %354 = vector.load %arg8[%c0_70, %c0_71] : memref<128x64xf32, #tpu.memory_space<vmem>>, vector<128x64xf32>
    %cst_72 = arith.constant dense<0.000000e+00> : vector<8x64xf32>
    %355 = tpu.matmul %327, %354, %cst_72 {dimension_numbers = #tpu.dot_dimension_numbers<[1], [0], [0], [1], [0, 0, 1, 1], [], []>} : vector<8x128xf32>, vector<128x64xf32>, vector<8x64xf32> -> vector<8x64xf32>
    %c0_73 = arith.constant 0 : index
    %c0_74 = arith.constant 0 : index
    %356 = vector.load %arg9[%c0_73, %c0_74] : memref<128x64xf32, #tpu.memory_space<vmem>>, vector<128x64xf32>
    %cst_75 = arith.constant dense<0.000000e+00> : vector<8x64xf32>
    %357 = tpu.matmul %353, %356, %cst_75 {dimension_numbers = #tpu.dot_dimension_numbers<[1], [0], [0], [1], [0, 0, 1, 1], [], []>} : vector<8x128xf32>, vector<128x64xf32>, vector<8x64xf32> -> vector<8x64xf32>
    %358 = arith.addf %355, %357 : vector<8x64xf32>
    %c0_76 = arith.constant 0 : index
    %c0_77 = arith.constant 0 : index
    %359 = vector.load %arg10[%c0_76, %c0_77] : memref<1x64xf32, #tpu.memory_space<vmem>>, vector<1x64xf32>
    %360 = vector.broadcast %359 : vector<1x64xf32> to vector<8x64xf32>
    %361 = arith.addf %358, %360 : vector<8x64xf32>
    %c0_78 = arith.constant 0 : index
    %c0_79 = arith.constant 0 : index
    %362 = vector.load %arg11[%c0_78, %c0_79] : memref<64x32xf32, #tpu.memory_space<vmem>>, vector<64x32xf32>
    %cst_80 = arith.constant dense<0.000000e+00> : vector<8x32xf32>
    %363 = tpu.matmul %361, %362, %cst_80 {dimension_numbers = #tpu.dot_dimension_numbers<[1], [0], [0], [1], [0, 0, 1, 1], [], []>} : vector<8x64xf32>, vector<64x32xf32>, vector<8x32xf32> -> vector<8x32xf32>
    %c0_81 = arith.constant 0 : index
    %c0_82 = arith.constant 0 : index
    %364 = vector.load %arg12[%c0_81, %c0_82] : memref<1x32xf32, #tpu.memory_space<vmem>>, vector<1x32xf32>
    %365 = vector.broadcast %364 : vector<1x32xf32> to vector<8x32xf32>
    %366 = arith.addf %363, %365 : vector<8x32xf32>
    %c0_83 = arith.constant 0 : index
    %c0_84 = arith.constant 0 : index
    %367 = vector.load %arg13[%c0_83, %c0_84] : memref<32x128xf32, #tpu.memory_space<vmem>>, vector<32x128xf32>
    %cst_85 = arith.constant dense<0.000000e+00> : vector<8x128xf32>
    %368 = tpu.matmul %366, %367, %cst_85 {dimension_numbers = #tpu.dot_dimension_numbers<[1], [0], [0], [1], [0, 0, 1, 1], [], []>} : vector<8x32xf32>, vector<32x128xf32>, vector<8x128xf32> -> vector<8x128xf32>
    %c0_86 = arith.constant 0 : index
    %c0_87 = arith.constant 0 : index
    %369 = vector.load %arg14[%c0_86, %c0_87] : memref<1x128xf32, #tpu.memory_space<vmem>>, vector<1x128xf32>
    %370 = vector.broadcast %369 : vector<1x128xf32> to vector<8x128xf32>
    %371 = arith.addf %368, %370 : vector<8x128xf32>
    %c0_88 = arith.constant 0 : index
    %c0_89 = arith.constant 0 : index
    %372 = vector.load %arg15[%c0_88, %c0_89] : memref<8x128xf32, #tpu.memory_space<vmem>>, vector<8x128xf32>
    tpu.vector_store %arg15[%c0_88, %c0_89], %371 {strides = array<i32>} : memref<8x128xf32, #tpu.memory_space<vmem>>, vector<8x128xf32>,
    return
  }
}

</mosaic_0001>

<llo_original>
// kernel: lstm_model_forward.1
$region0: #{lstm_model_forward.1}
  #allocation0 [shape = 'u32[]', space=smem, size = 0x4, offset = 0x4, fixed_abs, tag = 'smem constant byte address 0x4 - core index']
  #allocation1 [shape = 'u32[72,128]{1,0:T(1,128)}', space=vmem, size = 0x9000, scoped, tag = 'internal scratch']
  #allocation2 [shape = 'f32[64,512]{1,0:T(8,128)}', space=vmem, size = 0x20000, scoped, tag = 'scratch operand']
  %s0 = inlined_call_operand.vmem [shape: bf16[64,32], index: 0, kind: input, shape index: {}]
  %s1 = inlined_call_operand.vmem [shape: bf16[8,32], index: 1, kind: input, shape index: {}]
  %s2 = inlined_call_operand.vmem [shape: s32[8,1], index: 2, kind: input, shape index: {}]
  %s3 = inlined_call_operand.vmem [shape: bf16[32,512], index: 3, kind: input, shape index: {}]
  %s4 = inlined_call_operand.vmem [shape: bf16[128,512], index: 4, kind: input, shape index: {}]
  %s5 = inlined_call_operand.vmem [shape: f32[1,512], index: 5, kind: input, shape index: {}]
  %s6 = inlined_call_operand.vmem [shape: bf16[32,512], index: 6, kind: input, shape index: {}]
  %s7 = inlined_call_operand.vmem [shape: f32[1,512], index: 7, kind: input, shape index: {}]
  %s8 = inlined_call_operand.vmem [shape: f32[128,64], index: 8, kind: input, shape index: {}]
  %s9 = inlined_call_operand.vmem [shape: f32[128,64], index: 9, kind: input, shape index: {}]
  %s10 = inlined_call_operand.vmem [shape: f32[1,64], index: 10, kind: input, shape index: {}]
  %s11 = inlined_call_operand.vmem [shape: f32[64,32], index: 11, kind: input, shape index: {}]
  %s12 = inlined_call_operand.vmem [shape: f32[1,32], index: 12, kind: input, shape index: {}]
  %s13 = inlined_call_operand.vmem [shape: f32[32,128], index: 13, kind: input, shape index: {}]
  %s14 = inlined_call_operand.vmem [shape: f32[1,128], index: 14, kind: input, shape index: {}]
  %s15 = inlined_call_operand.vmem [shape: f32[8,128], index: 15, kind: output, shape index: {}]
  %s16 = sld [smem:[#allocation0]]
  $region70: #{lstm_model_forward.1} parent=0
    _
  %s18 = ssub.s32 1, %s16
  %s19 = scalar_select 0, %s18, %s16
  // Predicated region
  $region2: #{lstm_model_forward.1} parent=0 // pred_check
    _
  $region3: #{lstm_model_forward.1} parent=0 // pred_check_branch
    %21 = sbr.rel (0) target = $region5
  $region4: #{lstm_model_forward.1} parent=0 // pred_region
    _
  $region5: #{lstm_model_forward.1} parent=0 // pred_fallthru
    _
  // Predicated region
  $region6: #{lstm_model_forward.1} parent=0 // pred_check
    _
  $region7: #{lstm_model_forward.1} parent=0 // pred_check_branch
    %23 = sbr.rel (0) target = $region9
  $region8: #{lstm_model_forward.1} parent=0 // pred_region
    _
  $region9: #{lstm_model_forward.1} parent=0 // pred_fallthru
    _
  // Predicated region
  $region10: #{lstm_model_forward.1} parent=0 // pred_check
    _
  $region11: #{lstm_model_forward.1} parent=0 // pred_check_branch
    %25 = sbr.rel (0) target = $region13
  $region12: #{lstm_model_forward.1} parent=0 // pred_region
    _
  $region13: #{lstm_model_forward.1} parent=0 // pred_fallthru
    _
  // Predicated region
  $region14: #{lstm_model_forward.1} parent=0 // pred_check
    _
  $region15: #{lstm_model_forward.1} parent=0 // pred_check_branch
    %27 = sbr.rel (0) target = $region17
  $region16: #{lstm_model_forward.1} parent=0 // pred_region
    _
  $region17: #{lstm_model_forward.1} parent=0 // pred_fallthru
    _
  // Predicated region
  $region18: #{lstm_model_forward.1} parent=0 // pred_check
    _
  $region19: #{lstm_model_forward.1} parent=0 // pred_check_branch
    %29 = sbr.rel (0) target = $region21
  $region20: #{lstm_model_forward.1} parent=0 // pred_region
    _
  $region21: #{lstm_model_forward.1} parent=0 // pred_fallthru
    _
  // Predicated region
  $region22: #{lstm_model_forward.1} parent=0 // pred_check
    _
  $region23: #{lstm_model_forward.1} parent=0 // pred_check_branch
    %31 = sbr.rel (0) target = $region25
  $region24: #{lstm_model_forward.1} parent=0 // pred_region
    _
  $region25: #{lstm_model_forward.1} parent=0 // pred_fallthru
    _
  // Predicated region
  $region26: #{lstm_model_forward.1} parent=0 // pred_check
    _
  $region27: #{lstm_model_forward.1} parent=0 // pred_check_branch
    %33 = sbr.rel (0) target = $region29
  $region28: #{lstm_model_forward.1} parent=0 // pred_region
    _
  $region29: #{lstm_model_forward.1} parent=0 // pred_fallthru
    _
  // Predicated region
  $region30: #{lstm_model_forward.1} parent=0 // pred_check
    _
  $region31: #{lstm_model_forward.1} parent=0 // pred_check_branch
    %35 = sbr.rel (0) target = $region33
  $region32: #{lstm_model_forward.1} parent=0 // pred_region
    _
  $region33: #{lstm_model_forward.1} parent=0 // pred_fallthru
    _
  // Predicated region
  $region34: #{lstm_model_forward.1} parent=0 // pred_check
    _
  $region35: #{lstm_model_forward.1} parent=0 // pred_check_branch
    %37 = sbr.rel (0) target = $region37
  $region36: #{lstm_model_forward.1} parent=0 // pred_region
    _
  $region37: #{lstm_model_forward.1} parent=0 // pred_fallthru
    _
  // Predicated region
  $region38: #{lstm_model_forward.1} parent=0 // pred_check
    _
  $region39: #{lstm_model_forward.1} parent=0 // pred_check_branch
    %39 = sbr.rel (0) target = $region41
  $region40: #{lstm_model_forward.1} parent=0 // pred_region
    _
  $region41: #{lstm_model_forward.1} parent=0 // pred_fallthru
    _
  // Predicated region
  $region42: #{lstm_model_forward.1} parent=0 // pred_check
    _
  $region43: #{lstm_model_forward.1} parent=0 // pred_check_branch
    %41 = sbr.rel (0) target = $region45
  $region44: #{lstm_model_forward.1} parent=0 // pred_region
    _
  $region45: #{lstm_model_forward.1} parent=0 // pred_fallthru
    _
  // Predicated region
  $region46: #{lstm_model_forward.1} parent=0 // pred_check
    _
  $region47: #{lstm_model_forward.1} parent=0 // pred_check_branch
    %43 = sbr.rel (0) target = $region49
  $region48: #{lstm_model_forward.1} parent=0 // pred_region
    _
  $region49: #{lstm_model_forward.1} parent=0 // pred_fallthru
    _
  // Predicated region
  $region50: #{lstm_model_forward.1} parent=0 // pred_check
    _
  $region51: #{lstm_model_forward.1} parent=0 // pred_check_branch
    %45 = sbr.rel (0) target = $region53
  $region52: #{lstm_model_forward.1} parent=0 // pred_region
    _
  $region53: #{lstm_model_forward.1} parent=0 // pred_fallthru
    _
  // Predicated region
  $region54: #{lstm_model_forward.1} parent=0 // pred_check
    _
  $region55: #{lstm_model_forward.1} parent=0 // pred_check_branch
    %47 = sbr.rel (0) target = $region57
  $region56: #{lstm_model_forward.1} parent=0 // pred_region
    _
  $region57: #{lstm_model_forward.1} parent=0 // pred_fallthru
    _
  // Predicated region
  $region58: #{lstm_model_forward.1} parent=0 // pred_check
    _
  $region59: #{lstm_model_forward.1} parent=0 // pred_check_branch
    %49 = sbr.rel (0) target = $region61
  $region60: #{lstm_model_forward.1} parent=0 // pred_region
    _
  $region61: #{lstm_model_forward.1} parent=0 // pred_fallthru
    _
  %v51 = vld [vmem:[%s2] sm:$0xff]
  %v52 = vld [vmem:[%s0] sm:$0xf]
  %v53 = vld [vmem:[%s0 + $0x4] sm:$0xf]
  %v54 = vld [vmem:[%s0 + $0x8] sm:$0xf]
  %v55 = vld [vmem:[%s0 + $0xc] sm:$0xf]
  %v56 = vld [vmem:[%s0 + $0x10] sm:$0xf]
  %v57 = vld [vmem:[%s0 + $0x14] sm:$0xf]
  %v58 = vld [vmem:[%s0 + $0x18] sm:$0xf]
  %v59 = vld [vmem:[%s0 + $0x1c] sm:$0xf]
  %v60 = vld [vmem:[%s3] sm:$0xff]
  %v61 = vld [vmem:[%s3 + $0x8] sm:$0xff]
  %v62 = vld [vmem:[%s3 + $0x10] sm:$0xff]
  %v63 = vld [vmem:[%s3 + $0x18] sm:$0xff]
  %v64 = vld [vmem:[%s3 + $0x20] sm:$0xff]
  %v65 = vld [vmem:[%s3 + $0x28] sm:$0xff]
  %v66 = vld [vmem:[%s3 + $0x30] sm:$0xff]
  %v67 = vld [vmem:[%s3 + $0x38] sm:$0xff]
  %v68 = vld [vmem:[%s5] sm:$0xf]
  %v70 = vperm.slane %v68, 0
  %v71 = vperm.slane %v68, 1
  %v72 = vperm.slane %v68, 2
  %v73 = vperm.slane %v68, 3
  %v86 = vunpack.c.l.b16 %v52
  %v87 = vunpack.c.l.b16 %v53
  %v88 = vunpack.c.l.b16 %v54
  %v89 = vunpack.c.l.b16 %v55
  %v90 = vunpack.c.l.b16 %v56
  %v91 = vunpack.c.l.b16 %v57
  %v92 = vunpack.c.l.b16 %v58
  %v93 = vunpack.c.l.b16 %v59
  %v94 = vpack.c.b16 %v87, %v86
  %v95 = vpack.c.b16 %v89, %v88
  %v96 = vpack.c.b16 %v91, %v90
  %v97 = vpack.c.b16 %v93, %v92
  %v106 = vunpack.c.l.b16 %v60
  %v107 = vunpack.c.h.b16 %v60
  %v108 = vunpack.c.l.b16 %v61
  %v109 = vunpack.c.h.b16 %v61
  %v110 = vunpack.c.l.b16 %v62
  %v111 = vunpack.c.h.b16 %v62
  %v112 = vunpack.c.l.b16 %v63
  %v113 = vunpack.c.h.b16 %v63
  %v114 = vunpack.c.l.b16 %v64
  %v115 = vunpack.c.h.b16 %v64
  %v116 = vunpack.c.l.b16 %v65
  %v117 = vunpack.c.h.b16 %v65
  %v118 = vunpack.c.l.b16 %v66
  %v119 = vunpack.c.h.b16 %v66
  %v120 = vunpack.c.l.b16 %v67
  %v121 = vunpack.c.h.b16 %v67
  %v122 = vpack.c.b16 %v110, %v106
  %v123 = vpack.c.b16 %v111, %v107
  %v124 = vpack.c.b16 %v112, %v108
  %v125 = vpack.c.b16 %v113, %v109
  %v126 = vpack.c.b16 %v118, %v114
  %v127 = vpack.c.b16 %v119, %v115
  %v128 = vpack.c.b16 %v120, %v116
  %v129 = vpack.c.b16 %v121, %v117
  %vm138 = vcmask 261120
  %v140 = vsel %vm138, %v94, 0
  %v143 = vsel %vm138, %v95, 0
  %v146 = vsel %vm138, %v96, 0
  %v149 = vsel %vm138, %v97, 0
  %151 = vmatpush.bf16.msra.mxu0 0
  %152 = vmatpush.bf16.msra.mxu0 0
  %153 = vmatpush.bf16.msra.mxu0 0
  %154 = vmatpush.bf16.msra.mxu0 0
  %155 = vmatpush.bf16.msra.mxu0 0
  %156 = vmatpush.bf16.msra.mxu0 0
  %157 = vmatpush.bf16.msra.mxu0 %v126
  %158 = vmatpush.bf16.msra.mxu0 %v122
  %159 = vmatmul.bf16.gmra.mxu0 %v140
  %v160 = vpop.f32.mrf.mxu0
  %v161 = vadd.f32 %v70, %v160
  %v162 = vpop.f32.mrf.mxu0
  %v163 = vadd.f32 %v70, %v162
  %164 = vmatmul.bf16.gmra.mxu0 %v143
  %v165 = vpop.f32.mrf.mxu0
  %v166 = vadd.f32 %v70, %v165
  %v167 = vpop.f32.mrf.mxu0
  %v168 = vadd.f32 %v70, %v167
  %169 = vmatmul.bf16.gmra.mxu0 %v146
  %v170 = vpop.f32.mrf.mxu0
  %v171 = vadd.f32 %v70, %v170
  %v172 = vpop.f32.mrf.mxu0
  %v173 = vadd.f32 %v70, %v172
  %174 = vmatmul.bf16.gmra.mxu0 %v149
  %v175 = vpop.f32.mrf.mxu0
  %v176 = vadd.f32 %v70, %v175
  %v177 = vpop.f32.mrf.mxu0
  %v178 = vadd.f32 %v70, %v177
  %179 = vdwg.mxu0
  %180 = vmatpush.bf16.msra.mxu0 0
  %181 = vmatpush.bf16.msra.mxu0 0
  %182 = vmatpush.bf16.msra.mxu0 0
  %183 = vmatpush.bf16.msra.mxu0 0
  %184 = vmatpush.bf16.msra.mxu0 0
  %185 = vmatpush.bf16.msra.mxu0 0
  %186 = vmatpush.bf16.msra.mxu0 %v127
  %187 = vmatpush.bf16.msra.mxu0 %v123
  %188 = vmatmul.bf16.gmra.mxu0 %v140
  %v189 = vpop.f32.mrf.mxu0
  %v190 = vadd.f32 %v71, %v189
  %v191 = vpop.f32.mrf.mxu0
  %v192 = vadd.f32 %v71, %v191
  %193 = vmatmul.bf16.gmra.mxu0 %v143
  %v194 = vpop.f32.mrf.mxu0
  %v195 = vadd.f32 %v71, %v194
  %v196 = vpop.f32.mrf.mxu0
  %v197 = vadd.f32 %v71, %v196
  %198 = vmatmul.bf16.gmra.mxu0 %v146
  %v199 = vpop.f32.mrf.mxu0
  %v200 = vadd.f32 %v71, %v199
  %v201 = vpop.f32.mrf.mxu0
  %v202 = vadd.f32 %v71, %v201
  %203 = vmatmul.bf16.gmra.mxu0 %v149
  %v204 = vpop.f32.mrf.mxu0
  %v205 = vadd.f32 %v71, %v204
  %v206 = vpop.f32.mrf.mxu0
  %v207 = vadd.f32 %v71, %v206
  %208 = vdwg.mxu0
  %209 = vmatpush.bf16.msra.mxu0 0
  %210 = vmatpush.bf16.msra.mxu0 0
  %211 = vmatpush.bf16.msra.mxu0 0
  %212 = vmatpush.bf16.msra.mxu0 0
  %213 = vmatpush.bf16.msra.mxu0 0
  %214 = vmatpush.bf16.msra.mxu0 0
  %215 = vmatpush.bf16.msra.mxu0 %v128
  %216 = vmatpush.bf16.msra.mxu0 %v124
  %217 = vmatmul.bf16.gmra.mxu0 %v140
  %v218 = vpop.f32.mrf.mxu0
  %v219 = vadd.f32 %v72, %v218
  %v220 = vpop.f32.mrf.mxu0
  %v221 = vadd.f32 %v72, %v220
  %222 = vmatmul.bf16.gmra.mxu0 %v143
  %v223 = vpop.f32.mrf.mxu0
  %v224 = vadd.f32 %v72, %v223
  %v225 = vpop.f32.mrf.mxu0
  %v226 = vadd.f32 %v72, %v225
  %227 = vmatmul.bf16.gmra.mxu0 %v146
  %v228 = vpop.f32.mrf.mxu0
  %v229 = vadd.f32 %v72, %v228
  %v230 = vpop.f32.mrf.mxu0
  %v231 = vadd.f32 %v72, %v230
  %232 = vmatmul.bf16.gmra.mxu0 %v149
  %v233 = vpop.f32.mrf.mxu0
  %v234 = vadd.f32 %v72, %v233
  %v235 = vpop.f32.mrf.mxu0
  %v236 = vadd.f32 %v72, %v235
  %237 = vdwg.mxu0
  %238 = vmatpush.bf16.msra.mxu0 0
  %239 = vmatpush.bf16.msra.mxu0 0
  %240 = vmatpush.bf16.msra.mxu0 0
  %241 = vmatpush.bf16.msra.mxu0 0
  %242 = vmatpush.bf16.msra.mxu0 0
  %243 = vmatpush.bf16.msra.mxu0 0
  %244 = vmatpush.bf16.msra.mxu0 %v129
  %245 = vmatpush.bf16.msra.mxu0 %v125
  %246 = vmatmul.bf16.gmra.mxu0 %v140
  %v247 = vpop.f32.mrf.mxu0
  %v248 = vadd.f32 %v73, %v247
  %v249 = vpop.f32.mrf.mxu0
  %v250 = vadd.f32 %v73, %v249
  %251 = vmatmul.bf16.gmra.mxu0 %v143
  %v252 = vpop.f32.mrf.mxu0
  %v253 = vadd.f32 %v73, %v252
  %v254 = vpop.f32.mrf.mxu0
  %v255 = vadd.f32 %v73, %v254
  %256 = vmatmul.bf16.gmra.mxu0 %v146
  %v257 = vpop.f32.mrf.mxu0
  %v258 = vadd.f32 %v73, %v257
  %v259 = vpop.f32.mrf.mxu0
  %v260 = vadd.f32 %v73, %v259
  %261 = vmatmul.bf16.gmra.mxu0 %v149
  %v262 = vpop.f32.mrf.mxu0
  %v263 = vadd.f32 %v73, %v262
  %v264 = vpop.f32.mrf.mxu0
  %v265 = vadd.f32 %v73, %v264
  %266 = vdwg.mxu0
  %267 = vst [vmem:[#allocation2] sm:$0xff] %v161
  %268 = vst [vmem:[#allocation2 + $0x8] sm:$0xff] %v190
  %269 = vst [vmem:[#allocation2 + $0x10] sm:$0xff] %v219
  %270 = vst [vmem:[#allocation2 + $0x18] sm:$0xff] %v248
  %271 = vst [vmem:[#allocation2 + $0x20] sm:$0xff] %v163
  %272 = vst [vmem:[#allocation2 + $0x28] sm:$0xff] %v192
  %273 = vst [vmem:[#allocation2 + $0x30] sm:$0xff] %v221
  %274 = vst [vmem:[#allocation2 + $0x38] sm:$0xff] %v250
  %275 = vst [vmem:[#allocation2 + $0x40] sm:$0xff] %v166
  %276 = vst [vmem:[#allocation2 + $0x48] sm:$0xff] %v195
  %277 = vst [vmem:[#allocation2 + $0x50] sm:$0xff] %v224
  %278 = vst [vmem:[#allocation2 + $0x58] sm:$0xff] %v253
  %279 = vst [vmem:[#allocation2 + $0x60] sm:$0xff] %v168
  %280 = vst [vmem:[#allocation2 + $0x68] sm:$0xff] %v197
  %281 = vst [vmem:[#allocation2 + $0x70] sm:$0xff] %v226
  %282 = vst [vmem:[#allocation2 + $0x78] sm:$0xff] %v255
  %283 = vst [vmem:[#allocation2 + $0x80] sm:$0xff] %v171
  %284 = vst [vmem:[#allocation2 + $0x88] sm:$0xff] %v200
  %285 = vst [vmem:[#allocation2 + $0x90] sm:$0xff] %v229
  %286 = vst [vmem:[#allocation2 + $0x98] sm:$0xff] %v258
  %287 = vst [vmem:[#allocation2 + $0xa0] sm:$0xff] %v173
  %288 = vst [vmem:[#allocation2 + $0xa8] sm:$0xff] %v202
  %289 = vst [vmem:[#allocation2 + $0xb0] sm:$0xff] %v231
  %290 = vst [vmem:[#allocation2 + $0xb8] sm:$0xff] %v260
  %291 = vst [vmem:[#allocation2 + $0xc0] sm:$0xff] %v176
  %292 = vst [vmem:[#allocation2 + $0xc8] sm:$0xff] %v205
  %293 = vst [vmem:[#allocation2 + $0xd0] sm:$0xff] %v234
  %294 = vst [vmem:[#allocation2 + $0xd8] sm:$0xff] %v263
  %295 = vst [vmem:[#allocation2 + $0xe0] sm:$0xff] %v178
  %296 = vst [vmem:[#allocation2 + $0xe8] sm:$0xff] %v207
  %297 = vst [vmem:[#allocation2 + $0xf0] sm:$0xff] %v236
  %298 = vst [vmem:[#allocation2 + $0xf8] sm:$0xff] %v265
  %v299 = vld [vmem:[%s4] sm:$0xff]
  %v300 = vld [vmem:[%s4 + $0x8] sm:$0xff]
  %v301 = vld [vmem:[%s4 + $0x10] sm:$0xff]
  %v302 = vld [vmem:[%s4 + $0x18] sm:$0xff]
  %v303 = vld [vmem:[%s4 + $0x20] sm:$0xff]
  %v304 = vld [vmem:[%s4 + $0x28] sm:$0xff]
  %v305 = vld [vmem:[%s4 + $0x30] sm:$0xff]
  %v306 = vld [vmem:[%s4 + $0x38] sm:$0xff]
  %v307 = vld [vmem:[%s4 + $0x40] sm:$0xff]
  %v308 = vld [vmem:[%s4 + $0x48] sm:$0xff]
  %v309 = vld [vmem:[%s4 + $0x50] sm:$0xff]
  %v310 = vld [vmem:[%s4 + $0x58] sm:$0xff]
  %v311 = vld [vmem:[%s4 + $0x60] sm:$0xff]
  %v312 = vld [vmem:[%s4 + $0x68] sm:$0xff]
  %v313 = vld [vmem:[%s4 + $0x70] sm:$0xff]
  %v314 = vld [vmem:[%s4 + $0x78] sm:$0xff]
  %v315 = vld [vmem:[%s4 + $0x80] sm:$0xff]
  %v316 = vld [vmem:[%s4 + $0x88] sm:$0xff]
  %v317 = vld [vmem:[%s4 + $0x90] sm:$0xff]
  %v318 = vld [vmem:[%s4 + $0x98] sm:$0xff]
  %v319 = vld [vmem:[%s4 + $0xa0] sm:$0xff]
  %v320 = vld [vmem:[%s4 + $0xa8] sm:$0xff]
  %v321 = vld [vmem:[%s4 + $0xb0] sm:$0xff]
  %v322 = vld [vmem:[%s4 + $0xb8] sm:$0xff]
  %v323 = vld [vmem:[%s4 + $0xc0] sm:$0xff]
  %v324 = vld [vmem:[%s4 + $0xc8] sm:$0xff]
  %v325 = vld [vmem:[%s4 + $0xd0] sm:$0xff]
  %v326 = vld [vmem:[%s4 + $0xd8] sm:$0xff]
  %v327 = vld [vmem:[%s4 + $0xe0] sm:$0xff]
  %v328 = vld [vmem:[%s4 + $0xe8] sm:$0xff]
  %v329 = vld [vmem:[%s4 + $0xf0] sm:$0xff]
  %v330 = vld [vmem:[%s4 + $0xf8] sm:$0xff]
  %s331 = smul.u32 0, 4
  %s332 = smul.addr %s331, 8
  %s333 = scalar_lea.vmem [#allocation2], %s332
  %v334 = vld [vmem:[%s333] sm:$0xff]
  %v335 = vld [vmem:[%s333 + $0x8] sm:$0xff]
  %v336 = vld [vmem:[%s333 + $0x10] sm:$0xff]
  %v337 = vld [vmem:[%s333 + $0x18] sm:$0xff]
  %v370 = vunpack.c.l.b16 %v299
  %v371 = vunpack.c.h.b16 %v299
  %v372 = vunpack.c.l.b16 %v300
  %v373 = vunpack.c.h.b16 %v300
  %v374 = vunpack.c.l.b16 %v301
  %v375 = vunpack.c.h.b16 %v301
  %v376 = vunpack.c.l.b16 %v302
  %v377 = vunpack.c.h.b16 %v302
  %v378 = vunpack.c.l.b16 %v303
  %v379 = vunpack.c.h.b16 %v303
  %v380 = vunpack.c.l.b16 %v304
  %v381 = vunpack.c.h.b16 %v304
  %v382 = vunpack.c.l.b16 %v305
  %v383 = vunpack.c.h.b16 %v305
  %v384 = vunpack.c.l.b16 %v306
  %v385 = vunpack.c.h.b16 %v306
  %v386 = vunpack.c.l.b16 %v307
  %v387 = vunpack.c.h.b16 %v307
  %v388 = vunpack.c.l.b16 %v308
  %v389 = vunpack.c.h.b16 %v308
  %v390 = vunpack.c.l.b16 %v309
  %v391 = vunpack.c.h.b16 %v309
  %v392 = vunpack.c.l.b16 %v310
  %v393 = vunpack.c.h.b16 %v310
  %v394 = vunpack.c.l.b16 %v311
  %v395 = vunpack.c.h.b16 %v311
  %v396 = vunpack.c.l.b16 %v312
  %v397 = vunpack.c.h.b16 %v312
  %v398 = vunpack.c.l.b16 %v313
  %v399 = vunpack.c.h.b16 %v313
  %v400 = vunpack.c.l.b16 %v314
  %v401 = vunpack.c.h.b16 %v314
  %v402 = vunpack.c.l.b16 %v315
  %v403 = vunpack.c.h.b16 %v315
  %v404 = vunpack.c.l.b16 %v316
  %v405 = vunpack.c.h.b16 %v316
  %v406 = vunpack.c.l.b16 %v317
  %v407 = vunpack.c.h.b16 %v317
  %v408 = vunpack.c.l.b16 %v318
  %v409 = vunpack.c.h.b16 %v318
  %v410 = vunpack.c.l.b16 %v319
  %v411 = vunpack.c.h.b16 %v319
  %v412 = vunpack.c.l.b16 %v320
  %v413 = vunpack.c.h.b16 %v320
  %v414 = vunpack.c.l.b16 %v321
  %v415 = vunpack.c.h.b16 %v321
  %v416 = vunpack.c.l.b16 %v322
  %v417 = vunpack.c.h.b16 %v322
  %v418 = vunpack.c.l.b16 %v323
  %v419 = vunpack.c.h.b16 %v323
  %v420 = vunpack.c.l.b16 %v324
  %v421 = vunpack.c.h.b16 %v324
  %v422 = vunpack.c.l.b16 %v325
  %v423 = vunpack.c.h.b16 %v325
  %v424 = vunpack.c.l.b16 %v326
  %v425 = vunpack.c.h.b16 %v326
  %v426 = vunpack.c.l.b16 %v327
  %v427 = vunpack.c.h.b16 %v327
  %v428 = vunpack.c.l.b16 %v328
  %v429 = vunpack.c.h.b16 %v328
  %v430 = vunpack.c.l.b16 %v329
  %v431 = vunpack.c.h.b16 %v329
  %v432 = vunpack.c.l.b16 %v330
  %v433 = vunpack.c.h.b16 %v330
  %v434 = vpack.c.b16 %v374, %v370
  %v435 = vpack.c.b16 %v375, %v371
  %v436 = vpack.c.b16 %v376, %v372
  %v437 = vpack.c.b16 %v377, %v373
  %v438 = vpack.c.b16 %v382, %v378
  %v439 = vpack.c.b16 %v383, %v379
  %v440 = vpack.c.b16 %v384, %v380
  %v441 = vpack.c.b16 %v385, %v381
  %v442 = vpack.c.b16 %v390, %v386
  %v443 = vpack.c.b16 %v391, %v387
  %v444 = vpack.c.b16 %v392, %v388
  %v445 = vpack.c.b16 %v393, %v389
  %v446 = vpack.c.b16 %v398, %v394
  %v447 = vpack.c.b16 %v399, %v395
  %v448 = vpack.c.b16 %v400, %v396
  %v449 = vpack.c.b16 %v401, %v397
  %v450 = vpack.c.b16 %v406, %v402
  %v451 = vpack.c.b16 %v407, %v403
  %v452 = vpack.c.b16 %v408, %v404
  %v453 = vpack.c.b16 %v409, %v405
  %v454 = vpack.c.b16 %v414, %v410
  %v455 = vpack.c.b16 %v415, %v411
  %v456 = vpack.c.b16 %v416, %v412
  %v457 = vpack.c.b16 %v417, %v413
  %v458 = vpack.c.b16 %v422, %v418
  %v459 = vpack.c.b16 %v423, %v419
  %v460 = vpack.c.b16 %v424, %v420
  %v461 = vpack.c.b16 %v425, %v421
  %v462 = vpack.c.b16 %v430, %v426
  %v463 = vpack.c.b16 %v431, %v427
  %v464 = vpack.c.b16 %v432, %v428
  %v465 = vpack.c.b16 %v433, %v429
  %498 = vmatpush.bf16.msra.mxu0 %v462
  %499 = vmatpush.bf16.msra.mxu0 %v458
  %500 = vmatpush.bf16.msra.mxu0 %v454
  %501 = vmatpush.bf16.msra.mxu0 %v450
  %502 = vmatpush.bf16.msra.mxu0 %v446
  %503 = vmatpush.bf16.msra.mxu0 %v442
  %504 = vmatpush.bf16.msra.mxu0 %v438
  %505 = vmatpush.bf16.msra.mxu0 %v434
  %506 = vmatmul.bf16.gmra.mxu0 0
  %v507 = vpop.f32.mrf.mxu0
  %v508 = vadd.f32 0.0, %v507
  %v509 = vpop.f32.mrf.mxu0
  %510 = vdwg.mxu0
  %511 = vmatpush.bf16.msra.mxu0 %v463
  %512 = vmatpush.bf16.msra.mxu0 %v459
  %513 = vmatpush.bf16.msra.mxu0 %v455
  %514 = vmatpush.bf16.msra.mxu0 %v451
  %515 = vmatpush.bf16.msra.mxu0 %v447
  %516 = vmatpush.bf16.msra.mxu0 %v443
  %517 = vmatpush.bf16.msra.mxu0 %v439
  %518 = vmatpush.bf16.msra.mxu0 %v435
  %519 = vmatmul.bf16.gmra.mxu0 0
  %v520 = vpop.f32.mrf.mxu0
  %v521 = vadd.f32 0.0, %v520
  %v522 = vpop.f32.mrf.mxu0
  %523 = vdwg.mxu0
  %524 = vmatpush.bf16.msra.mxu0 %v464
  %525 = vmatpush.bf16.msra.mxu0 %v460
  %526 = vmatpush.bf16.msra.mxu0 %v456
  %527 = vmatpush.bf16.msra.mxu0 %v452
  %528 = vmatpush.bf16.msra.mxu0 %v448
  %529 = vmatpush.bf16.msra.mxu0 %v444
  %530 = vmatpush.bf16.msra.mxu0 %v440
  %531 = vmatpush.bf16.msra.mxu0 %v436
  %532 = vmatmul.bf16.gmra.mxu0 0
  %v533 = vpop.f32.mrf.mxu0
  %v534 = vadd.f32 0.0, %v533
  %v535 = vpop.f32.mrf.mxu0
  %536 = vdwg.mxu0
  %537 = vmatpush.bf16.msra.mxu0 %v465
  %538 = vmatpush.bf16.msra.mxu0 %v461
  %539 = vmatpush.bf16.msra.mxu0 %v457
  %540 = vmatpush.bf16.msra.mxu0 %v453
  %541 = vmatpush.bf16.msra.mxu0 %v449
  %542 = vmatpush.bf16.msra.mxu0 %v445
  %543 = vmatpush.bf16.msra.mxu0 %v441
  %544 = vmatpush.bf16.msra.mxu0 %v437
  %545 = vmatmul.bf16.gmra.mxu0 0
  %v546 = vpop.f32.mrf.mxu0
  %v547 = vadd.f32 0.0, %v546
  %v548 = vpop.f32.mrf.mxu0
  %549 = vdwg.mxu0
  %v550 = vadd.f32 %v334, %v508
  %v551 = vadd.f32 %v335, %v521
  %v552 = vadd.f32 %v336, %v534
  %v553 = vadd.f32 %v337, %v547
  %v554 = vxor.u32 %v550, 2147483648
  %v555 = vmul.f32 %v554, 1.442695
  %v556 = vpow.pop %v555
  %v557 = vadd.f32 %v556, 1.0
  %v558 = vrcp.pop %v557
  %v559 = vmul.f32 %v557, %v558
  %v560 = vsub.f32 1.0, %v559
  %v561 = vmul.f32 %v558, %v560
  %v562 = vadd.f32 %v558, %v561
  %vm563 = vweird.f32 %v557
  %vm564 = vweird.f32 %v558
  %vm565 = vmor %vm563, %vm564
  %v566 = vsel %vm565, %v558, %v562
  %v567 = vand.u32 2147483647, %v557
  %vm568 = vcmp.eq.f32.partialorder %v567, 8.507059e+37
  %v569 = vand.u32 %v557, 2147483648
  %v570 = vor.u32 1.1754944e-38, %v569
  %v571 = vsel %vm568, %v570, %v566
  %v572 = vmul.f32 1.0, %v571
  %v573 = vxor.u32 %v551, 2147483648
  %v574 = vmul.f32 %v573, 1.442695
  %v575 = vpow.pop %v574
  %v576 = vadd.f32 %v575, 1.0
  %v577 = vrcp.pop %v576
  %v578 = vmul.f32 %v576, %v577
  %v579 = vsub.f32 1.0, %v578
  %v580 = vmul.f32 %v577, %v579
  %v581 = vadd.f32 %v577, %v580
  %vm582 = vweird.f32 %v576
  %vm583 = vweird.f32 %v577
  %vm584 = vmor %vm582, %vm583
  %v585 = vsel %vm584, %v577, %v581
  %v586 = vand.u32 2147483647, %v576
  %vm587 = vcmp.eq.f32.partialorder %v586, 8.507059e+37
  %v588 = vand.u32 %v576, 2147483648
  %v589 = vor.u32 1.1754944e-38, %v588
  %v590 = vsel %vm587, %v589, %v585
  %v591 = vmul.f32 1.0, %v590
  %v592 = vtanh.pop %v552
  %v593 = vxor.u32 %v553, 2147483648
  %v594 = vmul.f32 %v593, 1.442695
  %v595 = vpow.pop %v594
  %v596 = vadd.f32 %v595, 1.0
  %v597 = vrcp.pop %v596
  %v598 = vmul.f32 %v596, %v597
  %v599 = vsub.f32 1.0, %v598
  %v600 = vmul.f32 %v597, %v599
  %v601 = vadd.f32 %v597, %v600
  %vm602 = vweird.f32 %v596
  %vm603 = vweird.f32 %v597
  %vm604 = vmor %vm602, %vm603
  %v605 = vsel %vm604, %v597, %v601
  %v606 = vand.u32 2147483647, %v596
  %vm607 = vcmp.eq.f32.partialorder %v606, 8.507059e+37
  %v608 = vand.u32 %v596, 2147483648
  %v609 = vor.u32 1.1754944e-38, %v608
  %v610 = vsel %vm607, %v609, %v605
  %v611 = vmul.f32 1.0, %v610
  %v612 = vmul.f32 %v591, 0.0
  %v613 = vmul.f32 %v572, %v592
  %v614 = vadd.f32 %v612, %v613
  %v615 = vtanh.pop %v614
  %v616 = vmul.f32 %v611, %v615
  %vm617 = vcmp.gt.s32.totalorder %v51, 0
  %v618 = vsel %vm617, 1, 0
  %619 = vset.pattern.permute.xlu0 0
  %620 = vperm.xlu0 %619, %v618
  %v621 = vpop.permute.xlu0 %620
  %vm622 = vcmp.eq.s32.totalorder %v621, 1
  %v623 = vsel %vm622, %v616, 0.0
  %v624 = vsel %vm622, %v614, 0.0
  %s625 = smul.u32 1, 4
  %s626 = smul.addr %s625, 8
  %s627 = scalar_lea.vmem [#allocation2], %s626
  %v628 = vld [vmem:[%s627] sm:$0xff]
  %v629 = vld [vmem:[%s627 + $0x8] sm:$0xff]
  %v630 = vld [vmem:[%s627 + $0x10] sm:$0xff]
  %v631 = vld [vmem:[%s627 + $0x18] sm:$0xff]
  %v632 = vpack.c.bf16 %v623, %v623
  %633 = vmatpush.bf16.msra.mxu0 %v462
  %634 = vmatpush.bf16.msra.mxu0 %v458
  %635 = vmatpush.bf16.msra.mxu0 %v454
  %636 = vmatpush.bf16.msra.mxu0 %v450
  %637 = vmatpush.bf16.msra.mxu0 %v446
  %638 = vmatpush.bf16.msra.mxu0 %v442
  %639 = vmatpush.bf16.msra.mxu0 %v438
  %640 = vmatpush.bf16.msra.mxu0 %v434
  %641 = vmatmul.bf16.gmra.mxu0 %v632
  %v642 = vpop.f32.mrf.mxu0
  %v643 = vadd.f32 0.0, %v642
  %v644 = vpop.f32.mrf.mxu0
  %645 = vdwg.mxu0
  %646 = vmatpush.bf16.msra.mxu0 %v463
  %647 = vmatpush.bf16.msra.mxu0 %v459
  %648 = vmatpush.bf16.msra.mxu0 %v455
  %649 = vmatpush.bf16.msra.mxu0 %v451
  %650 = vmatpush.bf16.msra.mxu0 %v447
  %651 = vmatpush.bf16.msra.mxu0 %v443
  %652 = vmatpush.bf16.msra.mxu0 %v439
  %653 = vmatpush.bf16.msra.mxu0 %v435
  %654 = vmatmul.bf16.gmra.mxu0 %v632
  %v655 = vpop.f32.mrf.mxu0
  %v656 = vadd.f32 0.0, %v655
  %v657 = vpop.f32.mrf.mxu0
  %658 = vdwg.mxu0
  %659 = vmatpush.bf16.msra.mxu0 %v464
  %660 = vmatpush.bf16.msra.mxu0 %v460
  %661 = vmatpush.bf16.msra.mxu0 %v456
  %662 = vmatpush.bf16.msra.mxu0 %v452
  %663 = vmatpush.bf16.msra.mxu0 %v448
  %664 = vmatpush.bf16.msra.mxu0 %v444
  %665 = vmatpush.bf16.msra.mxu0 %v440
  %666 = vmatpush.bf16.msra.mxu0 %v436
  %667 = vmatmul.bf16.gmra.mxu0 %v632
  %v668 = vpop.f32.mrf.mxu0
  %v669 = vadd.f32 0.0, %v668
  %v670 = vpop.f32.mrf.mxu0
  %671 = vdwg.mxu0
  %672 = vmatpush.bf16.msra.mxu0 %v465
  %673 = vmatpush.bf16.msra.mxu0 %v461
  %674 = vmatpush.bf16.msra.mxu0 %v457
  %675 = vmatpush.bf16.msra.mxu0 %v453
  %676 = vmatpush.bf16.msra.mxu0 %v449
  %677 = vmatpush.bf16.msra.mxu0 %v445
  %678 = vmatpush.bf16.msra.mxu0 %v441
  %679 = vmatpush.bf16.msra.mxu0 %v437
  %680 = vmatmul.bf16.gmra.mxu0 %v632
  %v681 = vpop.f32.mrf.mxu0
  %v682 = vadd.f32 0.0, %v681
  %v683 = vpop.f32.mrf.mxu0
  %684 = vdwg.mxu0
  %v685 = vadd.f32 %v628, %v643
  %v686 = vadd.f32 %v629, %v656
  %v687 = vadd.f32 %v630, %v669
  %v688 = vadd.f32 %v631, %v682
  %v689 = vxor.u32 %v685, 2147483648
  %v690 = vmul.f32 %v689, 1.442695
  %v691 = vpow.pop %v690
  %v692 = vadd.f32 %v691, 1.0
  %v693 = vrcp.pop %v692
  %v694 = vmul.f32 %v692, %v693
  %v695 = vsub.f32 1.0, %v694
  %v696 = vmul.f32 %v693, %v695
  %v697 = vadd.f32 %v693, %v696
  %vm698 = vweird.f32 %v692
  %vm699 = vweird.f32 %v693
  %vm700 = vmor %vm698, %vm699
  %v701 = vsel %vm700, %v693, %v697
  %v702 = vand.u32 2147483647, %v692
  %vm703 = vcmp.eq.f32.partialorder %v702, 8.507059e+37
  %v704 = vand.u32 %v692, 2147483648
  %v705 = vor.u32 1.1754944e-38, %v704
  %v706 = vsel %vm703, %v705, %v701
  %v707 = vmul.f32 1.0, %v706
  %v708 = vxor.u32 %v686, 2147483648
  %v709 = vmul.f32 %v708, 1.442695
  %v710 = vpow.pop %v709
  %v711 = vadd.f32 %v710, 1.0
  %v712 = vrcp.pop %v711
  %v713 = vmul.f32 %v711, %v712
  %v714 = vsub.f32 1.0, %v713
  %v715 = vmul.f32 %v712, %v714
  %v716 = vadd.f32 %v712, %v715
  %vm717 = vweird.f32 %v711
  %vm718 = vweird.f32 %v712
  %vm719 = vmor %vm717, %vm718
  %v720 = vsel %vm719, %v712, %v716
  %v721 = vand.u32 2147483647, %v711
  %vm722 = vcmp.eq.f32.partialorder %v721, 8.507059e+37
  %v723 = vand.u32 %v711, 2147483648
  %v724 = vor.u32 1.1754944e-38, %v723
  %v725 = vsel %vm722, %v724, %v720
  %v726 = vmul.f32 1.0, %v725
  %v727 = vtanh.pop %v687
  %v728 = vxor.u32 %v688, 2147483648
  %v729 = vmul.f32 %v728, 1.442695
  %v730 = vpow.pop %v729
  %v731 = vadd.f32 %v730, 1.0
  %v732 = vrcp.pop %v731
  %v733 = vmul.f32 %v731, %v732
  %v734 = vsub.f32 1.0, %v733
  %v735 = vmul.f32 %v732, %v734
  %v736 = vadd.f32 %v732, %v735
  %vm737 = vweird.f32 %v731
  %vm738 = vweird.f32 %v732
  %vm739 = vmor %vm737, %vm738
  %v740 = vsel %vm739, %v732, %v736
  %v741 = vand.u32 2147483647, %v731
  %vm742 = vcmp.eq.f32.partialorder %v741, 8.507059e+37
  %v743 = vand.u32 %v731, 2147483648
  %v744 = vor.u32 1.1754944e-38, %v743
  %v745 = vsel %vm742, %v744, %v740
  %v746 = vmul.f32 1.0, %v745
  %v747 = vmul.f32 %v726, %v624
  %v748 = vmul.f32 %v707, %v727
  %v749 = vadd.f32 %v747, %v748
  %v750 = vtanh.pop %v749
  %v751 = vmul.f32 %v746, %v750
  %vm752 = vcmp.gt.s32.totalorder %v51, 1
  %v753 = vsel %vm752, 1, 0
  %754 = vset.pattern.permute.xlu0 0
  %755 = vperm.xlu0 %754, %v753
  %v756 = vpop.permute.xlu0 %755
  %vm757 = vcmp.eq.s32.totalorder %v756, 1
  %v758 = vsel %vm757, %v751, %v623
  %v759 = vsel %vm757, %v749, %v624
  %s760 = smul.u32 2, 4
  %s761 = smul.addr %s760, 8
  %s762 = scalar_lea.vmem [#allocation2], %s761
  %v763 = vld [vmem:[%s762] sm:$0xff]
  %v764 = vld [vmem:[%s762 + $0x8] sm:$0xff]
  %v765 = vld [vmem:[%s762 + $0x10] sm:$0xff]
  %v766 = vld [vmem:[%s762 + $0x18] sm:$0xff]
  %v767 = vpack.c.bf16 %v758, %v758
  %768 = vmatpush.bf16.msra.mxu0 %v462
  %769 = vmatpush.bf16.msra.mxu0 %v458
  %770 = vmatpush.bf16.msra.mxu0 %v454
  %771 = vmatpush.bf16.msra.mxu0 %v450
  %772 = vmatpush.bf16.msra.mxu0 %v446
  %773 = vmatpush.bf16.msra.mxu0 %v442
  %774 = vmatpush.bf16.msra.mxu0 %v438
  %775 = vmatpush.bf16.msra.mxu0 %v434
  %776 = vmatmul.bf16.gmra.mxu0 %v767
  %v777 = vpop.f32.mrf.mxu0
  %v778 = vadd.f32 0.0, %v777
  %v779 = vpop.f32.mrf.mxu0
  %780 = vdwg.mxu0
  %781 = vmatpush.bf16.msra.mxu0 %v463
  %782 = vmatpush.bf16.msra.mxu0 %v459
  %783 = vmatpush.bf16.msra.mxu0 %v455
  %784 = vmatpush.bf16.msra.mxu0 %v451
  %785 = vmatpush.bf16.msra.mxu0 %v447
  %786 = vmatpush.bf16.msra.mxu0 %v443
  %787 = vmatpush.bf16.msra.mxu0 %v439
  %788 = vmatpush.bf16.msra.mxu0 %v435
  %789 = vmatmul.bf16.gmra.mxu0 %v767
  %v790 = vpop.f32.mrf.mxu0
  %v791 = vadd.f32 0.0, %v790
  %v792 = vpop.f32.mrf.mxu0
  %793 = vdwg.mxu0
  %794 = vmatpush.bf16.msra.mxu0 %v464
  %795 = vmatpush.bf16.msra.mxu0 %v460
  %796 = vmatpush.bf16.msra.mxu0 %v456
  %797 = vmatpush.bf16.msra.mxu0 %v452
  %798 = vmatpush.bf16.msra.mxu0 %v448
  %799 = vmatpush.bf16.msra.mxu0 %v444
  %800 = vmatpush.bf16.msra.mxu0 %v440
  %801 = vmatpush.bf16.msra.mxu0 %v436
  %802 = vmatmul.bf16.gmra.mxu0 %v767
  %v803 = vpop.f32.mrf.mxu0
  %v804 = vadd.f32 0.0, %v803
  %v805 = vpop.f32.mrf.mxu0
  %806 = vdwg.mxu0
  %807 = vmatpush.bf16.msra.mxu0 %v465
  %808 = vmatpush.bf16.msra.mxu0 %v461
  %809 = vmatpush.bf16.msra.mxu0 %v457
  %810 = vmatpush.bf16.msra.mxu0 %v453
  %811 = vmatpush.bf16.msra.mxu0 %v449
  %812 = vmatpush.bf16.msra.mxu0 %v445
  %813 = vmatpush.bf16.msra.mxu0 %v441
  %814 = vmatpush.bf16.msra.mxu0 %v437
  %815 = vmatmul.bf16.gmra.mxu0 %v767
  %v816 = vpop.f32.mrf.mxu0
  %v817 = vadd.f32 0.0, %v816
  %v818 = vpop.f32.mrf.mxu0
  %819 = vdwg.mxu0
  %v820 = vadd.f32 %v763, %v778
  %v821 = vadd.f32 %v764, %v791
  %v822 = vadd.f32 %v765, %v804
  %v823 = vadd.f32 %v766, %v817
  %v824 = vxor.u32 %v820, 2147483648
  %v825 = vmul.f32 %v824, 1.442695
  %v826 = vpow.pop %v825
  %v827 = vadd.f32 %v826, 1.0
  %v828 = vrcp.pop %v827
  %v829 = vmul.f32 %v827, %v828
  %v830 = vsub.f32 1.0, %v829
  %v831 = vmul.f32 %v828, %v830
  %v832 = vadd.f32 %v828, %v831
  %vm833 = vweird.f32 %v827
  %vm834 = vweird.f32 %v828
  %vm835 = vmor %vm833, %vm834
  %v836 = vsel %vm835, %v828, %v832
  %v837 = vand.u32 2147483647, %v827
  %vm838 = vcmp.eq.f32.partialorder %v837, 8.507059e+37
  %v839 = vand.u32 %v827, 2147483648
  %v840 = vor.u32 1.1754944e-38, %v839
  %v841 = vsel %vm838, %v840, %v836
  %v842 = vmul.f32 1.0, %v841
  %v843 = vxor.u32 %v821, 2147483648
  %v844 = vmul.f32 %v843, 1.442695
  %v845 = vpow.pop %v844
  %v846 = vadd.f32 %v845, 1.0
  %v847 = vrcp.pop %v846
  %v848 = vmul.f32 %v846, %v847
  %v849 = vsub.f32 1.0, %v848
  %v850 = vmul.f32 %v847, %v849
  %v851 = vadd.f32 %v847, %v850
  %vm852 = vweird.f32 %v846
  %vm853 = vweird.f32 %v847
  %vm854 = vmor %vm852, %vm853
  %v855 = vsel %vm854, %v847, %v851
  %v856 = vand.u32 2147483647, %v846
  %vm857 = vcmp.eq.f32.partialorder %v856, 8.507059e+37
  %v858 = vand.u32 %v846, 2147483648
  %v859 = vor.u32 1.1754944e-38, %v858
  %v860 = vsel %vm857, %v859, %v855
  %v861 = vmul.f32 1.0, %v860
  %v862 = vtanh.pop %v822
  %v863 = vxor.u32 %v823, 2147483648
  %v864 = vmul.f32 %v863, 1.442695
  %v865 = vpow.pop %v864
  %v866 = vadd.f32 %v865, 1.0
  %v867 = vrcp.pop %v866
  %v868 = vmul.f32 %v866, %v867
  %v869 = vsub.f32 1.0, %v868
  %v870 = vmul.f32 %v867, %v869
  %v871 = vadd.f32 %v867, %v870
  %vm872 = vweird.f32 %v866
  %vm873 = vweird.f32 %v867
  %vm874 = vmor %vm872, %vm873
  %v875 = vsel %vm874, %v867, %v871
  %v876 = vand.u32 2147483647, %v866
  %vm877 = vcmp.eq.f32.partialorder %v876, 8.507059e+37
  %v878 = vand.u32 %v866, 2147483648
  %v879 = vor.u32 1.1754944e-38, %v878
  %v880 = vsel %vm877, %v879, %v875
  %v881 = vmul.f32 1.0, %v880
  %v882 = vmul.f32 %v861, %v759
  %v883 = vmul.f32 %v842, %v862
  %v884 = vadd.f32 %v882, %v883
  %v885 = vtanh.pop %v884
  %v886 = vmul.f32 %v881, %v885
  %vm887 = vcmp.gt.s32.totalorder %v51, 2
  %v888 = vsel %vm887, 1, 0
  %889 = vset.pattern.permute.xlu0 0
  %890 = vperm.xlu0 %889, %v888
  %v891 = vpop.permute.xlu0 %890
  %vm892 = vcmp.eq.s32.totalorder %v891, 1
  %v893 = vsel %vm892, %v886, %v758
  %v894 = vsel %vm892, %v884, %v759
  %s895 = smul.u32 3, 4
  %s896 = smul.addr %s895, 8
  %s897 = scalar_lea.vmem [#allocation2], %s896
  %v898 = vld [vmem:[%s897] sm:$0xff]
  %v899 = vld [vmem:[%s897 + $0x8] sm:$0xff]
  %v900 = vld [vmem:[%s897 + $0x10] sm:$0xff]
  %v901 = vld [vmem:[%s897 + $0x18] sm:$0xff]
  %v902 = vpack.c.bf16 %v893, %v893
  %903 = vmatpush.bf16.msra.mxu0 %v462
  %904 = vmatpush.bf16.msra.mxu0 %v458
  %905 = vmatpush.bf16.msra.mxu0 %v454
  %906 = vmatpush.bf16.msra.mxu0 %v450
  %907 = vmatpush.bf16.msra.mxu0 %v446
  %908 = vmatpush.bf16.msra.mxu0 %v442
  %909 = vmatpush.bf16.msra.mxu0 %v438
  %910 = vmatpush.bf16.msra.mxu0 %v434
  %911 = vmatmul.bf16.gmra.mxu0 %v902
  %v912 = vpop.f32.mrf.mxu0
  %v913 = vadd.f32 0.0, %v912
  %v914 = vpop.f32.mrf.mxu0
  %915 = vdwg.mxu0
  %916 = vmatpush.bf16.msra.mxu0 %v463
  %917 = vmatpush.bf16.msra.mxu0 %v459
  %918 = vmatpush.bf16.msra.mxu0 %v455
  %919 = vmatpush.bf16.msra.mxu0 %v451
  %920 = vmatpush.bf16.msra.mxu0 %v447
  %921 = vmatpush.bf16.msra.mxu0 %v443
  %922 = vmatpush.bf16.msra.mxu0 %v439
  %923 = vmatpush.bf16.msra.mxu0 %v435
  %924 = vmatmul.bf16.gmra.mxu0 %v902
  %v925 = vpop.f32.mrf.mxu0
  %v926 = vadd.f32 0.0, %v925
  %v927 = vpop.f32.mrf.mxu0
  %928 = vdwg.mxu0
  %929 = vmatpush.bf16.msra.mxu0 %v464
  %930 = vmatpush.bf16.msra.mxu0 %v460
  %931 = vmatpush.bf16.msra.mxu0 %v456
  %932 = vmatpush.bf16.msra.mxu0 %v452
  %933 = vmatpush.bf16.msra.mxu0 %v448
  %934 = vmatpush.bf16.msra.mxu0 %v444
  %935 = vmatpush.bf16.msra.mxu0 %v440
  %936 = vmatpush.bf16.msra.mxu0 %v436
  %937 = vmatmul.bf16.gmra.mxu0 %v902
  %v938 = vpop.f32.mrf.mxu0
  %v939 = vadd.f32 0.0, %v938
  %v940 = vpop.f32.mrf.mxu0
  %941 = vdwg.mxu0
  %942 = vmatpush.bf16.msra.mxu0 %v465
  %943 = vmatpush.bf16.msra.mxu0 %v461
  %944 = vmatpush.bf16.msra.mxu0 %v457
  %945 = vmatpush.bf16.msra.mxu0 %v453
  %946 = vmatpush.bf16.msra.mxu0 %v449
  %947 = vmatpush.bf16.msra.mxu0 %v445
  %948 = vmatpush.bf16.msra.mxu0 %v441
  %949 = vmatpush.bf16.msra.mxu0 %v437
  %950 = vmatmul.bf16.gmra.mxu0 %v902
  %v951 = vpop.f32.mrf.mxu0
  %v952 = vadd.f32 0.0, %v951
  %v953 = vpop.f32.mrf.mxu0
  %954 = vdwg.mxu0
  %v955 = vadd.f32 %v898, %v913
  %v956 = vadd.f32 %v899, %v926
  %v957 = vadd.f32 %v900, %v939
  %v958 = vadd.f32 %v901, %v952
  %v959 = vxor.u32 %v955, 2147483648
  %v960 = vmul.f32 %v959, 1.442695
  %v961 = vpow.pop %v960
  %v962 = vadd.f32 %v961, 1.0
  %v963 = vrcp.pop %v962
  %v964 = vmul.f32 %v962, %v963
  %v965 = vsub.f32 1.0, %v964
  %v966 = vmul.f32 %v963, %v965
  %v967 = vadd.f32 %v963, %v966
  %vm968 = vweird.f32 %v962
  %vm969 = vweird.f32 %v963
  %vm970 = vmor %vm968, %vm969
  %v971 = vsel %vm970, %v963, %v967
  %v972 = vand.u32 2147483647, %v962
  %vm973 = vcmp.eq.f32.partialorder %v972, 8.507059e+37
  %v974 = vand.u32 %v962, 2147483648
  %v975 = vor.u32 1.1754944e-38, %v974
  %v976 = vsel %vm973, %v975, %v971
  %v977 = vmul.f32 1.0, %v976
  %v978 = vxor.u32 %v956, 2147483648
  %v979 = vmul.f32 %v978, 1.442695
  %v980 = vpow.pop %v979
  %v981 = vadd.f32 %v980, 1.0
  %v982 = vrcp.pop %v981
  %v983 = vmul.f32 %v981, %v982
  %v984 = vsub.f32 1.0, %v983
  %v985 = vmul.f32 %v982, %v984
  %v986 = vadd.f32 %v982, %v985
  %vm987 = vweird.f32 %v981
  %vm988 = vweird.f32 %v982
  %vm989 = vmor %vm987, %vm988
  %v990 = vsel %vm989, %v982, %v986
  %v991 = vand.u32 2147483647, %v981
  %vm992 = vcmp.eq.f32.partialorder %v991, 8.507059e+37
  %v993 = vand.u32 %v981, 2147483648
  %v994 = vor.u32 1.1754944e-38, %v993
  %v995 = vsel %vm992, %v994, %v990
  %v996 = vmul.f32 1.0, %v995
  %v997 = vtanh.pop %v957
  %v998 = vxor.u32 %v958, 2147483648
  %v999 = vmul.f32 %v998, 1.442695
  %v1000 = vpow.pop %v999
  %v1001 = vadd.f32 %v1000, 1.0
  %v1002 = vrcp.pop %v1001
  %v1003 = vmul.f32 %v1001, %v1002
  %v1004 = vsub.f32 1.0, %v1003
  %v1005 = vmul.f32 %v1002, %v1004
  %v1006 = vadd.f32 %v1002, %v1005
  %vm1007 = vweird.f32 %v1001
  %vm1008 = vweird.f32 %v1002
  %vm1009 = vmor %vm1007, %vm1008
  %v1010 = vsel %vm1009, %v1002, %v1006
  %v1011 = vand.u32 2147483647, %v1001
  %vm1012 = vcmp.eq.f32.partialorder %v1011, 8.507059e+37
  %v1013 = vand.u32 %v1001, 2147483648
  %v1014 = vor.u32 1.1754944e-38, %v1013
  %v1015 = vsel %vm1012, %v1014, %v1010
  %v1016 = vmul.f32 1.0, %v1015
  %v1017 = vmul.f32 %v996, %v894
  %v1018 = vmul.f32 %v977, %v997
  %v1019 = vadd.f32 %v1017, %v1018
  %v1020 = vtanh.pop %v1019
  %v1021 = vmul.f32 %v1016, %v1020
  %vm1022 = vcmp.gt.s32.totalorder %v51, 3
  %v1023 = vsel %vm1022, 1, 0
  %1024 = vset.pattern.permute.xlu0 0
  %1025 = vperm.xlu0 %1024, %v1023
  %v1026 = vpop.permute.xlu0 %1025
  %vm1027 = vcmp.eq.s32.totalorder %v1026, 1
  %v1028 = vsel %vm1027, %v1021, %v893
  %v1029 = vsel %vm1027, %v1019, %v894
  %s1030 = smul.u32 4, 4
  %s1031 = smul.addr %s1030, 8
  %s1032 = scalar_lea.vmem [#allocation2], %s1031
  %v1033 = vld [vmem:[%s1032] sm:$0xff]
  %v1034 = vld [vmem:[%s1032 + $0x8] sm:$0xff]
  %v1035 = vld [vmem:[%s1032 + $0x10] sm:$0xff]
  %v1036 = vld [vmem:[%s1032 + $0x18] sm:$0xff]
  %v1037 = vpack.c.bf16 %v1028, %v1028
  %1038 = vmatpush.bf16.msra.mxu0 %v462
  %1039 = vmatpush.bf16.msra.mxu0 %v458
  %1040 = vmatpush.bf16.msra.mxu0 %v454
  %1041 = vmatpush.bf16.msra.mxu0 %v450
  %1042 = vmatpush.bf16.msra.mxu0 %v446
  %1043 = vmatpush.bf16.msra.mxu0 %v442
  %1044 = vmatpush.bf16.msra.mxu0 %v438
  %1045 = vmatpush.bf16.msra.mxu0 %v434
  %1046 = vmatmul.bf16.gmra.mxu0 %v1037
  %v1047 = vpop.f32.mrf.mxu0
  %v1048 = vadd.f32 0.0, %v1047
  %v1049 = vpop.f32.mrf.mxu0
  %1050 = vdwg.mxu0
  %1051 = vmatpush.bf16.msra.mxu0 %v463
  %1052 = vmatpush.bf16.msra.mxu0 %v459
  %1053 = vmatpush.bf16.msra.mxu0 %v455
  %1054 = vmatpush.bf16.msra.mxu0 %v451
  %1055 = vmatpush.bf16.msra.mxu0 %v447
  %1056 = vmatpush.bf16.msra.mxu0 %v443
  %1057 = vmatpush.bf16.msra.mxu0 %v439
  %1058 = vmatpush.bf16.msra.mxu0 %v435
  %1059 = vmatmul.bf16.gmra.mxu0 %v1037
  %v1060 = vpop.f32.mrf.mxu0
  %v1061 = vadd.f32 0.0, %v1060
  %v1062 = vpop.f32.mrf.mxu0
  %1063 = vdwg.mxu0
  %1064 = vmatpush.bf16.msra.mxu0 %v464
  %1065 = vmatpush.bf16.msra.mxu0 %v460
  %1066 = vmatpush.bf16.msra.mxu0 %v456
  %1067 = vmatpush.bf16.msra.mxu0 %v452
  %1068 = vmatpush.bf16.msra.mxu0 %v448
  %1069 = vmatpush.bf16.msra.mxu0 %v444
  %1070 = vmatpush.bf16.msra.mxu0 %v440
  %1071 = vmatpush.bf16.msra.mxu0 %v436
  %1072 = vmatmul.bf16.gmra.mxu0 %v1037
  %v1073 = vpop.f32.mrf.mxu0
  %v1074 = vadd.f32 0.0, %v1073
  %v1075 = vpop.f32.mrf.mxu0
  %1076 = vdwg.mxu0
  %1077 = vmatpush.bf16.msra.mxu0 %v465
  %1078 = vmatpush.bf16.msra.mxu0 %v461
  %1079 = vmatpush.bf16.msra.mxu0 %v457
  %1080 = vmatpush.bf16.msra.mxu0 %v453
  %1081 = vmatpush.bf16.msra.mxu0 %v449
  %1082 = vmatpush.bf16.msra.mxu0 %v445
  %1083 = vmatpush.bf16.msra.mxu0 %v441
  %1084 = vmatpush.bf16.msra.mxu0 %v437
  %1085 = vmatmul.bf16.gmra.mxu0 %v1037
  %v1086 = vpop.f32.mrf.mxu0
  %v1087 = vadd.f32 0.0, %v1086
  %v1088 = vpop.f32.mrf.mxu0
  %1089 = vdwg.mxu0
  %v1090 = vadd.f32 %v1033, %v1048
  %v1091 = vadd.f32 %v1034, %v1061
  %v1092 = vadd.f32 %v1035, %v1074
  %v1093 = vadd.f32 %v1036, %v1087
  %v1094 = vxor.u32 %v1090, 2147483648
  %v1095 = vmul.f32 %v1094, 1.442695
  %v1096 = vpow.pop %v1095
  %v1097 = vadd.f32 %v1096, 1.0
  %v1098 = vrcp.pop %v1097
  %v1099 = vmul.f32 %v1097, %v1098
  %v1100 = vsub.f32 1.0, %v1099
  %v1101 = vmul.f32 %v1098, %v1100
  %v1102 = vadd.f32 %v1098, %v1101
  %vm1103 = vweird.f32 %v1097
  %vm1104 = vweird.f32 %v1098
  %vm1105 = vmor %vm1103, %vm1104
  %v1106 = vsel %vm1105, %v1098, %v1102
  %v1107 = vand.u32 2147483647, %v1097
  %vm1108 = vcmp.eq.f32.partialorder %v1107, 8.507059e+37
  %v1109 = vand.u32 %v1097, 2147483648
  %v1110 = vor.u32 1.1754944e-38, %v1109
  %v1111 = vsel %vm1108, %v1110, %v1106
  %v1112 = vmul.f32 1.0, %v1111
  %v1113 = vxor.u32 %v1091, 2147483648
  %v1114 = vmul.f32 %v1113, 1.442695
  %v1115 = vpow.pop %v1114
  %v1116 = vadd.f32 %v1115, 1.0
  %v1117 = vrcp.pop %v1116
  %v1118 = vmul.f32 %v1116, %v1117
  %v1119 = vsub.f32 1.0, %v1118
  %v1120 = vmul.f32 %v1117, %v1119
  %v1121 = vadd.f32 %v1117, %v1120
  %vm1122 = vweird.f32 %v1116
  %vm1123 = vweird.f32 %v1117
  %vm1124 = vmor %vm1122, %vm1123
  %v1125 = vsel %vm1124, %v1117, %v1121
  %v1126 = vand.u32 2147483647, %v1116
  %vm1127 = vcmp.eq.f32.partialorder %v1126, 8.507059e+37
  %v1128 = vand.u32 %v1116, 2147483648
  %v1129 = vor.u32 1.1754944e-38, %v1128
  %v1130 = vsel %vm1127, %v1129, %v1125
  %v1131 = vmul.f32 1.0, %v1130
  %v1132 = vtanh.pop %v1092
  %v1133 = vxor.u32 %v1093, 2147483648
  %v1134 = vmul.f32 %v1133, 1.442695
  %v1135 = vpow.pop %v1134
  %v1136 = vadd.f32 %v1135, 1.0
  %v1137 = vrcp.pop %v1136
  %v1138 = vmul.f32 %v1136, %v1137
  %v1139 = vsub.f32 1.0, %v1138
  %v1140 = vmul.f32 %v1137, %v1139
  %v1141 = vadd.f32 %v1137, %v1140
  %vm1142 = vweird.f32 %v1136
  %vm1143 = vweird.f32 %v1137
  %vm1144 = vmor %vm1142, %vm1143
  %v1145 = vsel %vm1144, %v1137, %v1141
  %v1146 = vand.u32 2147483647, %v1136
  %vm1147 = vcmp.eq.f32.partialorder %v1146, 8.507059e+37
  %v1148 = vand.u32 %v1136, 2147483648
  %v1149 = vor.u32 1.1754944e-38, %v1148
  %v1150 = vsel %vm1147, %v1149, %v1145
  %v1151 = vmul.f32 1.0, %v1150
  %v1152 = vmul.f32 %v1131, %v1029
  %v1153 = vmul.f32 %v1112, %v1132
  %v1154 = vadd.f32 %v1152, %v1153
  %v1155 = vtanh.pop %v1154
  %v1156 = vmul.f32 %v1151, %v1155
  %vm1157 = vcmp.gt.s32.totalorder %v51, 4
  %v1158 = vsel %vm1157, 1, 0
  %1159 = vset.pattern.permute.xlu0 0
  %1160 = vperm.xlu0 %1159, %v1158
  %v1161 = vpop.permute.xlu0 %1160
  %vm1162 = vcmp.eq.s32.totalorder %v1161, 1
  %v1163 = vsel %vm1162, %v1156, %v1028
  %v1164 = vsel %vm1162, %v1154, %v1029
  %s1165 = smul.u32 5, 4
  %s1166 = smul.addr %s1165, 8
  %s1167 = scalar_lea.vmem [#allocation2], %s1166
  %v1168 = vld [vmem:[%s1167] sm:$0xff]
  %v1169 = vld [vmem:[%s1167 + $0x8] sm:$0xff]
  %v1170 = vld [vmem:[%s1167 + $0x10] sm:$0xff]
  %v1171 = vld [vmem:[%s1167 + $0x18] sm:$0xff]
  %v1172 = vpack.c.bf16 %v1163, %v1163
  %1173 = vmatpush.bf16.msra.mxu0 %v462
  %1174 = vmatpush.bf16.msra.mxu0 %v458
  %1175 = vmatpush.bf16.msra.mxu0 %v454
  %1176 = vmatpush.bf16.msra.mxu0 %v450
  %1177 = vmatpush.bf16.msra.mxu0 %v446
  %1178 = vmatpush.bf16.msra.mxu0 %v442
  %1179 = vmatpush.bf16.msra.mxu0 %v438
  %1180 = vmatpush.bf16.msra.mxu0 %v434
  %1181 = vmatmul.bf16.gmra.mxu0 %v1172
  %v1182 = vpop.f32.mrf.mxu0
  %v1183 = vadd.f32 0.0, %v1182
  %v1184 = vpop.f32.mrf.mxu0
  %1185 = vdwg.mxu0
  %1186 = vmatpush.bf16.msra.mxu0 %v463
  %1187 = vmatpush.bf16.msra.mxu0 %v459
  %1188 = vmatpush.bf16.msra.mxu0 %v455
  %1189 = vmatpush.bf16.msra.mxu0 %v451
  %1190 = vmatpush.bf16.msra.mxu0 %v447
  %1191 = vmatpush.bf16.msra.mxu0 %v443
  %1192 = vmatpush.bf16.msra.mxu0 %v439
  %1193 = vmatpush.bf16.msra.mxu0 %v435
  %1194 = vmatmul.bf16.gmra.mxu0 %v1172
  %v1195 = vpop.f32.mrf.mxu0
  %v1196 = vadd.f32 0.0, %v1195
  %v1197 = vpop.f32.mrf.mxu0
  %1198 = vdwg.mxu0
  %1199 = vmatpush.bf16.msra.mxu0 %v464
  %1200 = vmatpush.bf16.msra.mxu0 %v460
  %1201 = vmatpush.bf16.msra.mxu0 %v456
  %1202 = vmatpush.bf16.msra.mxu0 %v452
  %1203 = vmatpush.bf16.msra.mxu0 %v448
  %1204 = vmatpush.bf16.msra.mxu0 %v444
  %1205 = vmatpush.bf16.msra.mxu0 %v440
  %1206 = vmatpush.bf16.msra.mxu0 %v436
  %1207 = vmatmul.bf16.gmra.mxu0 %v1172
  %v1208 = vpop.f32.mrf.mxu0
  %v1209 = vadd.f32 0.0, %v1208
  %v1210 = vpop.f32.mrf.mxu0
  %1211 = vdwg.mxu0
  %1212 = vmatpush.bf16.msra.mxu0 %v465
  %1213 = vmatpush.bf16.msra.mxu0 %v461
  %1214 = vmatpush.bf16.msra.mxu0 %v457
  %1215 = vmatpush.bf16.msra.mxu0 %v453
  %1216 = vmatpush.bf16.msra.mxu0 %v449
  %1217 = vmatpush.bf16.msra.mxu0 %v445
  %1218 = vmatpush.bf16.msra.mxu0 %v441
  %1219 = vmatpush.bf16.msra.mxu0 %v437
  %1220 = vmatmul.bf16.gmra.mxu0 %v1172
  %v1221 = vpop.f32.mrf.mxu0
  %v1222 = vadd.f32 0.0, %v1221
  %v1223 = vpop.f32.mrf.mxu0
  %1224 = vdwg.mxu0
  %v1225 = vadd.f32 %v1168, %v1183
  %v1226 = vadd.f32 %v1169, %v1196
  %v1227 = vadd.f32 %v1170, %v1209
  %v1228 = vadd.f32 %v1171, %v1222
  %v1229 = vxor.u32 %v1225, 2147483648
  %v1230 = vmul.f32 %v1229, 1.442695
  %v1231 = vpow.pop %v1230
  %v1232 = vadd.f32 %v1231, 1.0
  %v1233 = vrcp.pop %v1232
  %v1234 = vmul.f32 %v1232, %v1233
  %v1235 = vsub.f32 1.0, %v1234
  %v1236 = vmul.f32 %v1233, %v1235
  %v1237 = vadd.f32 %v1233, %v1236
  %vm1238 = vweird.f32 %v1232
  %vm1239 = vweird.f32 %v1233
  %vm1240 = vmor %vm1238, %vm1239
  %v1241 = vsel %vm1240, %v1233, %v1237
  %v1242 = vand.u32 2147483647, %v1232
  %vm1243 = vcmp.eq.f32.partialorder %v1242, 8.507059e+37
  %v1244 = vand.u32 %v1232, 2147483648
  %v1245 = vor.u32 1.1754944e-38, %v1244
  %v1246 = vsel %vm1243, %v1245, %v1241
  %v1247 = vmul.f32 1.0, %v1246
  %v1248 = vxor.u32 %v1226, 2147483648
  %v1249 = vmul.f32 %v1248, 1.442695
  %v1250 = vpow.pop %v1249
  %v1251 = vadd.f32 %v1250, 1.0
  %v1252 = vrcp.pop %v1251
  %v1253 = vmul.f32 %v1251, %v1252
  %v1254 = vsub.f32 1.0, %v1253
  %v1255 = vmul.f32 %v1252, %v1254
  %v1256 = vadd.f32 %v1252, %v1255
  %vm1257 = vweird.f32 %v1251
  %vm1258 = vweird.f32 %v1252
  %vm1259 = vmor %vm1257, %vm1258
  %v1260 = vsel %vm1259, %v1252, %v1256
  %v1261 = vand.u32 2147483647, %v1251
  %vm1262 = vcmp.eq.f32.partialorder %v1261, 8.507059e+37
  %v1263 = vand.u32 %v1251, 2147483648
  %v1264 = vor.u32 1.1754944e-38, %v1263
  %v1265 = vsel %vm1262, %v1264, %v1260
  %v1266 = vmul.f32 1.0, %v1265
  %v1267 = vtanh.pop %v1227
  %v1268 = vxor.u32 %v1228, 2147483648
  %v1269 = vmul.f32 %v1268, 1.442695
  %v1270 = vpow.pop %v1269
  %v1271 = vadd.f32 %v1270, 1.0
  %v1272 = vrcp.pop %v1271
  %v1273 = vmul.f32 %v1271, %v1272
  %v1274 = vsub.f32 1.0, %v1273
  %v1275 = vmul.f32 %v1272, %v1274
  %v1276 = vadd.f32 %v1272, %v1275
  %vm1277 = vweird.f32 %v1271
  %vm1278 = vweird.f32 %v1272
  %vm1279 = vmor %vm1277, %vm1278
  %v1280 = vsel %vm1279, %v1272, %v1276
  %v1281 = vand.u32 2147483647, %v1271
  %vm1282 = vcmp.eq.f32.partialorder %v1281, 8.507059e+37
  %v1283 = vand.u32 %v1271, 2147483648
  %v1284 = vor.u32 1.1754944e-38, %v1283
  %v1285 = vsel %vm1282, %v1284, %v1280
  %v1286 = vmul.f32 1.0, %v1285
  %v1287 = vmul.f32 %v1266, %v1164
  %v1288 = vmul.f32 %v1247, %v1267
  %v1289 = vadd.f32 %v1287, %v1288
  %v1290 = vtanh.pop %v1289
  %v1291 = vmul.f32 %v1286, %v1290
  %vm1292 = vcmp.gt.s32.totalorder %v51, 5
  %v1293 = vsel %vm1292, 1, 0
  %1294 = vset.pattern.permute.xlu0 0
  %1295 = vperm.xlu0 %1294, %v1293
  %v1296 = vpop.permute.xlu0 %1295
  %vm1297 = vcmp.eq.s32.totalorder %v1296, 1
  %v1298 = vsel %vm1297, %v1291, %v1163
  %v1299 = vsel %vm1297, %v1289, %v1164
  %s1300 = smul.u32 6, 4
  %s1301 = smul.addr %s1300, 8
  %s1302 = scalar_lea.vmem [#allocation2], %s1301
  %v1303 = vld [vmem:[%s1302] sm:$0xff]
  %v1304 = vld [vmem:[%s1302 + $0x8] sm:$0xff]
  %v1305 = vld [vmem:[%s1302 + $0x10] sm:$0xff]
  %v1306 = vld [vmem:[%s1302 + $0x18] sm:$0xff]
  %v1307 = vpack.c.bf16 %v1298, %v1298
  %1308 = vmatpush.bf16.msra.mxu0 %v462
  %1309 = vmatpush.bf16.msra.mxu0 %v458
  %1310 = vmatpush.bf16.msra.mxu0 %v454
  %1311 = vmatpush.bf16.msra.mxu0 %v450
  %1312 = vmatpush.bf16.msra.mxu0 %v446
  %1313 = vmatpush.bf16.msra.mxu0 %v442
  %1314 = vmatpush.bf16.msra.mxu0 %v438
  %1315 = vmatpush.bf16.msra.mxu0 %v434
  %1316 = vmatmul.bf16.gmra.mxu0 %v1307
  %v1317 = vpop.f32.mrf.mxu0
  %v1318 = vadd.f32 0.0, %v1317
  %v1319 = vpop.f32.mrf.mxu0
  %1320 = vdwg.mxu0
  %1321 = vmatpush.bf16.msra.mxu0 %v463
  %1322 = vmatpush.bf16.msra.mxu0 %v459
  %1323 = vmatpush.bf16.msra.mxu0 %v455
  %1324 = vmatpush.bf16.msra.mxu0 %v451
  %1325 = vmatpush.bf16.msra.mxu0 %v447
  %1326 = vmatpush.bf16.msra.mxu0 %v443
  %1327 = vmatpush.bf16.msra.mxu0 %v439
  %1328 = vmatpush.bf16.msra.mxu0 %v435
  %1329 = vmatmul.bf16.gmra.mxu0 %v1307
  %v1330 = vpop.f32.mrf.mxu0
  %v1331 = vadd.f32 0.0, %v1330
  %v1332 = vpop.f32.mrf.mxu0
  %1333 = vdwg.mxu0
  %1334 = vmatpush.bf16.msra.mxu0 %v464
  %1335 = vmatpush.bf16.msra.mxu0 %v460
  %1336 = vmatpush.bf16.msra.mxu0 %v456
  %1337 = vmatpush.bf16.msra.mxu0 %v452
  %1338 = vmatpush.bf16.msra.mxu0 %v448
  %1339 = vmatpush.bf16.msra.mxu0 %v444
  %1340 = vmatpush.bf16.msra.mxu0 %v440
  %1341 = vmatpush.bf16.msra.mxu0 %v436
  %1342 = vmatmul.bf16.gmra.mxu0 %v1307
  %v1343 = vpop.f32.mrf.mxu0
  %v1344 = vadd.f32 0.0, %v1343
  %v1345 = vpop.f32.mrf.mxu0
  %1346 = vdwg.mxu0
  %1347 = vmatpush.bf16.msra.mxu0 %v465
  %1348 = vmatpush.bf16.msra.mxu0 %v461
  %1349 = vmatpush.bf16.msra.mxu0 %v457
  %1350 = vmatpush.bf16.msra.mxu0 %v453
  %1351 = vmatpush.bf16.msra.mxu0 %v449
  %1352 = vmatpush.bf16.msra.mxu0 %v445
  %1353 = vmatpush.bf16.msra.mxu0 %v441
  %1354 = vmatpush.bf16.msra.mxu0 %v437
  %1355 = vmatmul.bf16.gmra.mxu0 %v1307
  %v1356 = vpop.f32.mrf.mxu0
  %v1357 = vadd.f32 0.0, %v1356
  %v1358 = vpop.f32.mrf.mxu0
  %1359 = vdwg.mxu0
  %v1360 = vadd.f32 %v1303, %v1318
  %v1361 = vadd.f32 %v1304, %v1331
  %v1362 = vadd.f32 %v1305, %v1344
  %v1363 = vadd.f32 %v1306, %v1357
  %v1364 = vxor.u32 %v1360, 2147483648
  %v1365 = vmul.f32 %v1364, 1.442695
  %v1366 = vpow.pop %v1365
  %v1367 = vadd.f32 %v1366, 1.0
  %v1368 = vrcp.pop %v1367
  %v1369 = vmul.f32 %v1367, %v1368
  %v1370 = vsub.f32 1.0, %v1369
  %v1371 = vmul.f32 %v1368, %v1370
  %v1372 = vadd.f32 %v1368, %v1371
  %vm1373 = vweird.f32 %v1367
  %vm1374 = vweird.f32 %v1368
  %vm1375 = vmor %vm1373, %vm1374
  %v1376 = vsel %vm1375, %v1368, %v1372
  %v1377 = vand.u32 2147483647, %v1367
  %vm1378 = vcmp.eq.f32.partialorder %v1377, 8.507059e+37
  %v1379 = vand.u32 %v1367, 2147483648
  %v1380 = vor.u32 1.1754944e-38, %v1379
  %v1381 = vsel %vm1378, %v1380, %v1376
  %v1382 = vmul.f32 1.0, %v1381
  %v1383 = vxor.u32 %v1361, 2147483648
  %v1384 = vmul.f32 %v1383, 1.442695
  %v1385 = vpow.pop %v1384
  %v1386 = vadd.f32 %v1385, 1.0
  %v1387 = vrcp.pop %v1386
  %v1388 = vmul.f32 %v1386, %v1387
  %v1389 = vsub.f32 1.0, %v1388
  %v1390 = vmul.f32 %v1387, %v1389
  %v1391 = vadd.f32 %v1387, %v1390
  %vm1392 = vweird.f32 %v1386
  %vm1393 = vweird.f32 %v1387
  %vm1394 = vmor %vm1392, %vm1393
  %v1395 = vsel %vm1394, %v1387, %v1391
  %v1396 = vand.u32 2147483647, %v1386
  %vm1397 = vcmp.eq.f32.partialorder %v1396, 8.507059e+37
  %v1398 = vand.u32 %v1386, 2147483648
  %v1399 = vor.u32 1.1754944e-38, %v1398
  %v1400 = vsel %vm1397, %v1399, %v1395
  %v1401 = vmul.f32 1.0, %v1400
  %v1402 = vtanh.pop %v1362
  %v1403 = vxor.u32 %v1363, 2147483648
  %v1404 = vmul.f32 %v1403, 1.442695
  %v1405 = vpow.pop %v1404
  %v1406 = vadd.f32 %v1405, 1.0
  %v1407 = vrcp.pop %v1406
  %v1408 = vmul.f32 %v1406, %v1407
  %v1409 = vsub.f32 1.0, %v1408
  %v1410 = vmul.f32 %v1407, %v1409
  %v1411 = vadd.f32 %v1407, %v1410
  %vm1412 = vweird.f32 %v1406
  %vm1413 = vweird.f32 %v1407
  %vm1414 = vmor %vm1412, %vm1413
  %v1415 = vsel %vm1414, %v1407, %v1411
  %v1416 = vand.u32 2147483647, %v1406
  %vm1417 = vcmp.eq.f32.partialorder %v1416, 8.507059e+37
  %v1418 = vand.u32 %v1406, 2147483648
  %v1419 = vor.u32 1.1754944e-38, %v1418
  %v1420 = vsel %vm1417, %v1419, %v1415
  %v1421 = vmul.f32 1.0, %v1420
  %v1422 = vmul.f32 %v1401, %v1299
  %v1423 = vmul.f32 %v1382, %v1402
  %v1424 = vadd.f32 %v1422, %v1423
  %v1425 = vtanh.pop %v1424
  %v1426 = vmul.f32 %v1421, %v1425
  %vm1427 = vcmp.gt.s32.totalorder %v51, 6
  %v1428 = vsel %vm1427, 1, 0
  %1429 = vset.pattern.permute.xlu0 0
  %1430 = vperm.xlu0 %1429, %v1428
  %v1431 = vpop.permute.xlu0 %1430
  %vm1432 = vcmp.eq.s32.totalorder %v1431, 1
  %v1433 = vsel %vm1432, %v1426, %v1298
  %v1434 = vsel %vm1432, %v1424, %v1299
  %s1435 = smul.u32 7, 4
  %s1436 = smul.addr %s1435, 8
  %s1437 = scalar_lea.vmem [#allocation2], %s1436
  %v1438 = vld [vmem:[%s1437] sm:$0xff]
  %v1439 = vld [vmem:[%s1437 + $0x8] sm:$0xff]
  %v1440 = vld [vmem:[%s1437 + $0x10] sm:$0xff]
  %v1441 = vld [vmem:[%s1437 + $0x18] sm:$0xff]
  %v1442 = vpack.c.bf16 %v1433, %v1433
  %1443 = vmatpush.bf16.msra.mxu0 %v462
  %1444 = vmatpush.bf16.msra.mxu0 %v458
  %1445 = vmatpush.bf16.msra.mxu0 %v454
  %1446 = vmatpush.bf16.msra.mxu0 %v450
  %1447 = vmatpush.bf16.msra.mxu0 %v446
  %1448 = vmatpush.bf16.msra.mxu0 %v442
  %1449 = vmatpush.bf16.msra.mxu0 %v438
  %1450 = vmatpush.bf16.msra.mxu0 %v434
  %1451 = vmatmul.bf16.gmra.mxu0 %v1442
  %v1452 = vpop.f32.mrf.mxu0
  %v1453 = vadd.f32 0.0, %v1452
  %v1454 = vpop.f32.mrf.mxu0
  %1455 = vdwg.mxu0
  %1456 = vmatpush.bf16.msra.mxu0 %v463
  %1457 = vmatpush.bf16.msra.mxu0 %v459
  %1458 = vmatpush.bf16.msra.mxu0 %v455
  %1459 = vmatpush.bf16.msra.mxu0 %v451
  %1460 = vmatpush.bf16.msra.mxu0 %v447
  %1461 = vmatpush.bf16.msra.mxu0 %v443
  %1462 = vmatpush.bf16.msra.mxu0 %v439
  %1463 = vmatpush.bf16.msra.mxu0 %v435
  %1464 = vmatmul.bf16.gmra.mxu0 %v1442
  %v1465 = vpop.f32.mrf.mxu0
  %v1466 = vadd.f32 0.0, %v1465
  %v1467 = vpop.f32.mrf.mxu0
  %1468 = vdwg.mxu0
  %1469 = vmatpush.bf16.msra.mxu0 %v464
  %1470 = vmatpush.bf16.msra.mxu0 %v460
  %1471 = vmatpush.bf16.msra.mxu0 %v456
  %1472 = vmatpush.bf16.msra.mxu0 %v452
  %1473 = vmatpush.bf16.msra.mxu0 %v448
  %1474 = vmatpush.bf16.msra.mxu0 %v444
  %1475 = vmatpush.bf16.msra.mxu0 %v440
  %1476 = vmatpush.bf16.msra.mxu0 %v436
  %1477 = vmatmul.bf16.gmra.mxu0 %v1442
  %v1478 = vpop.f32.mrf.mxu0
  %v1479 = vadd.f32 0.0, %v1478
  %v1480 = vpop.f32.mrf.mxu0
  %1481 = vdwg.mxu0
  %1482 = vmatpush.bf16.msra.mxu0 %v465
  %1483 = vmatpush.bf16.msra.mxu0 %v461
  %1484 = vmatpush.bf16.msra.mxu0 %v457
  %1485 = vmatpush.bf16.msra.mxu0 %v453
  %1486 = vmatpush.bf16.msra.mxu0 %v449
  %1487 = vmatpush.bf16.msra.mxu0 %v445
  %1488 = vmatpush.bf16.msra.mxu0 %v441
  %1489 = vmatpush.bf16.msra.mxu0 %v437
  %1490 = vmatmul.bf16.gmra.mxu0 %v1442
  %v1491 = vpop.f32.mrf.mxu0
  %v1492 = vadd.f32 0.0, %v1491
  %v1493 = vpop.f32.mrf.mxu0
  %1494 = vdwg.mxu0
  %v1495 = vadd.f32 %v1438, %v1453
  %v1496 = vadd.f32 %v1439, %v1466
  %v1497 = vadd.f32 %v1440, %v1479
  %v1498 = vadd.f32 %v1441, %v1492
  %v1499 = vxor.u32 %v1495, 2147483648
  %v1500 = vmul.f32 %v1499, 1.442695
  %v1501 = vpow.pop %v1500
  %v1502 = vadd.f32 %v1501, 1.0
  %v1503 = vrcp.pop %v1502
  %v1504 = vmul.f32 %v1502, %v1503
  %v1505 = vsub.f32 1.0, %v1504
  %v1506 = vmul.f32 %v1503, %v1505
  %v1507 = vadd.f32 %v1503, %v1506
  %vm1508 = vweird.f32 %v1502
  %vm1509 = vweird.f32 %v1503
  %vm1510 = vmor %vm1508, %vm1509
  %v1511 = vsel %vm1510, %v1503, %v1507
  %v1512 = vand.u32 2147483647, %v1502
  %vm1513 = vcmp.eq.f32.partialorder %v1512, 8.507059e+37
  %v1514 = vand.u32 %v1502, 2147483648
  %v1515 = vor.u32 1.1754944e-38, %v1514
  %v1516 = vsel %vm1513, %v1515, %v1511
  %v1517 = vmul.f32 1.0, %v1516
  %v1518 = vxor.u32 %v1496, 2147483648
  %v1519 = vmul.f32 %v1518, 1.442695
  %v1520 = vpow.pop %v1519
  %v1521 = vadd.f32 %v1520, 1.0
  %v1522 = vrcp.pop %v1521
  %v1523 = vmul.f32 %v1521, %v1522
  %v1524 = vsub.f32 1.0, %v1523
  %v1525 = vmul.f32 %v1522, %v1524
  %v1526 = vadd.f32 %v1522, %v1525
  %vm1527 = vweird.f32 %v1521
  %vm1528 = vweird.f32 %v1522
  %vm1529 = vmor %vm1527, %vm1528
  %v1530 = vsel %vm1529, %v1522, %v1526
  %v1531 = vand.u32 2147483647, %v1521
  %vm1532 = vcmp.eq.f32.partialorder %v1531, 8.507059e+37
  %v1533 = vand.u32 %v1521, 2147483648
  %v1534 = vor.u32 1.1754944e-38, %v1533
  %v1535 = vsel %vm1532, %v1534, %v1530
  %v1536 = vmul.f32 1.0, %v1535
  %v1537 = vtanh.pop %v1497
  %v1538 = vxor.u32 %v1498, 2147483648
  %v1539 = vmul.f32 %v1538, 1.442695
  %v1540 = vpow.pop %v1539
  %v1541 = vadd.f32 %v1540, 1.0
  %v1542 = vrcp.pop %v1541
  %v1543 = vmul.f32 %v1541, %v1542
  %v1544 = vsub.f32 1.0, %v1543
  %v1545 = vmul.f32 %v1542, %v1544
  %v1546 = vadd.f32 %v1542, %v1545
  %vm1547 = vweird.f32 %v1541
  %vm1548 = vweird.f32 %v1542
  %vm1549 = vmor %vm1547, %vm1548
  %v1550 = vsel %vm1549, %v1542, %v1546
  %v1551 = vand.u32 2147483647, %v1541
  %vm1552 = vcmp.eq.f32.partialorder %v1551, 8.507059e+37
  %v1553 = vand.u32 %v1541, 2147483648
  %v1554 = vor.u32 1.1754944e-38, %v1553
  %v1555 = vsel %vm1552, %v1554, %v1550
  %v1556 = vmul.f32 1.0, %v1555
  %v1557 = vmul.f32 %v1536, %v1434
  %v1558 = vmul.f32 %v1517, %v1537
  %v1559 = vadd.f32 %v1557, %v1558
  %v1560 = vtanh.pop %v1559
  %v1561 = vmul.f32 %v1556, %v1560
  %vm1562 = vcmp.gt.s32.totalorder %v51, 7
  %v1563 = vsel %vm1562, 1, 0
  %1564 = vset.pattern.permute.xlu0 0
  %1565 = vperm.xlu0 %1564, %v1563
  %v1566 = vpop.permute.xlu0 %1565
  %vm1567 = vcmp.eq.s32.totalorder %v1566, 1
  %v1568 = vsel %vm1567, %v1561, %v1433
  %v1569 = vld [vmem:[%s1] sm:$0xf]
  %v1570 = vld [vmem:[%s6] sm:$0xff]
  %v1571 = vld [vmem:[%s6 + $0x8] sm:$0xff]
  %v1572 = vld [vmem:[%s6 + $0x10] sm:$0xff]
  %v1573 = vld [vmem:[%s6 + $0x18] sm:$0xff]
  %v1574 = vld [vmem:[%s6 + $0x20] sm:$0xff]
  %v1575 = vld [vmem:[%s6 + $0x28] sm:$0xff]
  %v1576 = vld [vmem:[%s6 + $0x30] sm:$0xff]
  %v1577 = vld [vmem:[%s6 + $0x38] sm:$0xff]
  %v1578 = vld [vmem:[%s7] sm:$0xf]
  %v1580 = vperm.slane %v1578, 0
  %v1581 = vperm.slane %v1578, 2
  %v1582 = vperm.slane %v1578, 3
  %v1594 = vunpack.c.l.b16 %v1570
  %v1595 = vunpack.c.l.b16 %v1571
  %v1596 = vunpack.c.h.b16 %v1571
  %v1597 = vunpack.c.l.b16 %v1572
  %v1598 = vunpack.c.l.b16 %v1573
  %v1599 = vunpack.c.h.b16 %v1573
  %v1600 = vunpack.c.l.b16 %v1574
  %v1601 = vunpack.c.l.b16 %v1575
  %v1602 = vunpack.c.h.b16 %v1575
  %v1603 = vunpack.c.l.b16 %v1576
  %v1604 = vunpack.c.l.b16 %v1577
  %v1605 = vunpack.c.h.b16 %v1577
  %v1606 = vpack.c.b16 %v1597, %v1594
  %v1607 = vpack.c.b16 %v1598, %v1595
  %v1608 = vpack.c.b16 %v1599, %v1596
  %v1609 = vpack.c.b16 %v1603, %v1600
  %v1610 = vpack.c.b16 %v1604, %v1601
  %v1611 = vpack.c.b16 %v1605, %v1602
  %v1619 = vsel %vm138, %v1569, 0
  %1621 = vmatpush.bf16.msra.mxu0 0
  %1622 = vmatpush.bf16.msra.mxu0 0
  %1623 = vmatpush.bf16.msra.mxu0 0
  %1624 = vmatpush.bf16.msra.mxu0 0
  %1625 = vmatpush.bf16.msra.mxu0 0
  %1626 = vmatpush.bf16.msra.mxu0 0
  %1627 = vmatpush.bf16.msra.mxu0 %v1609
  %1628 = vmatpush.bf16.msra.mxu0 %v1606
  %1629 = vmatmul.bf16.gmra.mxu0 %v1619
  %v1630 = vpop.f32.mrf.mxu0
  %v1631 = vadd.f32 %v1580, %v1630
  %v1632 = vpop.f32.mrf.mxu0
  %1633 = vdwg.mxu0
  %1634 = vmatpush.bf16.msra.mxu0 0
  %1635 = vmatpush.bf16.msra.mxu0 0
  %1636 = vmatpush.bf16.msra.mxu0 0
  %1637 = vmatpush.bf16.msra.mxu0 0
  %1638 = vmatpush.bf16.msra.mxu0 0
  %1639 = vmatpush.bf16.msra.mxu0 0
  %1640 = vmatpush.bf16.msra.mxu0 %v1610
  %1641 = vmatpush.bf16.msra.mxu0 %v1607
  %1642 = vmatmul.bf16.gmra.mxu0 %v1619
  %v1643 = vpop.f32.mrf.mxu0
  %v1644 = vadd.f32 %v1581, %v1643
  %v1645 = vpop.f32.mrf.mxu0
  %1646 = vdwg.mxu0
  %1647 = vmatpush.bf16.msra.mxu0 0
  %1648 = vmatpush.bf16.msra.mxu0 0
  %1649 = vmatpush.bf16.msra.mxu0 0
  %1650 = vmatpush.bf16.msra.mxu0 0
  %1651 = vmatpush.bf16.msra.mxu0 0
  %1652 = vmatpush.bf16.msra.mxu0 0
  %1653 = vmatpush.bf16.msra.mxu0 %v1611
  %1654 = vmatpush.bf16.msra.mxu0 %v1608
  %1655 = vmatmul.bf16.gmra.mxu0 %v1619
  %v1656 = vpop.f32.mrf.mxu0
  %v1657 = vadd.f32 %v1582, %v1656
  %v1658 = vpop.f32.mrf.mxu0
  %1659 = vdwg.mxu0
  %v1660 = vxor.u32 %v1631, 2147483648
  %v1661 = vmul.f32 %v1660, 1.442695
  %v1662 = vpow.pop %v1661
  %v1663 = vadd.f32 %v1662, 1.0
  %v1664 = vrcp.pop %v1663
  %v1665 = vmul.f32 %v1663, %v1664
  %v1666 = vsub.f32 1.0, %v1665
  %v1667 = vmul.f32 %v1664, %v1666
  %v1668 = vadd.f32 %v1664, %v1667
  %vm1669 = vweird.f32 %v1663
  %vm1670 = vweird.f32 %v1664
  %vm1671 = vmor %vm1669, %vm1670
  %v1672 = vsel %vm1671, %v1664, %v1668
  %v1673 = vand.u32 2147483647, %v1663
  %vm1674 = vcmp.eq.f32.partialorder %v1673, 8.507059e+37
  %v1675 = vand.u32 %v1663, 2147483648
  %v1676 = vor.u32 1.1754944e-38, %v1675
  %v1677 = vsel %vm1674, %v1676, %v1672
  %v1678 = vmul.f32 1.0, %v1677
  %v1679 = vtanh.pop %v1644
  %v1680 = vxor.u32 %v1657, 2147483648
  %v1681 = vmul.f32 %v1680, 1.442695
  %v1682 = vpow.pop %v1681
  %v1683 = vadd.f32 %v1682, 1.0
  %v1684 = vrcp.pop %v1683
  %v1685 = vmul.f32 %v1683, %v1684
  %v1686 = vsub.f32 1.0, %v1685
  %v1687 = vmul.f32 %v1684, %v1686
  %v1688 = vadd.f32 %v1684, %v1687
  %vm1689 = vweird.f32 %v1683
  %vm1690 = vweird.f32 %v1684
  %vm1691 = vmor %vm1689, %vm1690
  %v1692 = vsel %vm1691, %v1684, %v1688
  %v1693 = vand.u32 2147483647, %v1683
  %vm1694 = vcmp.eq.f32.partialorder %v1693, 8.507059e+37
  %v1695 = vand.u32 %v1683, 2147483648
  %v1696 = vor.u32 1.1754944e-38, %v1695
  %v1697 = vsel %vm1694, %v1696, %v1692
  %v1698 = vmul.f32 1.0, %v1697
  %v1699 = vmul.f32 %v1678, %v1679
  %v1700 = vtanh.pop %v1699
  %v1701 = vmul.f32 %v1698, %v1700
  %v1702 = vld [vmem:[%s8] sm:$0xff]
  %v1703 = vld [vmem:[%s8 + $0x8] sm:$0xff]
  %v1704 = vld [vmem:[%s8 + $0x10] sm:$0xff]
  %v1705 = vld [vmem:[%s8 + $0x18] sm:$0xff]
  %v1706 = vld [vmem:[%s8 + $0x20] sm:$0xff]
  %v1707 = vld [vmem:[%s8 + $0x28] sm:$0xff]
  %v1708 = vld [vmem:[%s8 + $0x30] sm:$0xff]
  %v1709 = vld [vmem:[%s8 + $0x38] sm:$0xff]
  %v1710 = vld [vmem:[%s8 + $0x40] sm:$0xff]
  %v1711 = vld [vmem:[%s8 + $0x48] sm:$0xff]
  %v1712 = vld [vmem:[%s8 + $0x50] sm:$0xff]
  %v1713 = vld [vmem:[%s8 + $0x58] sm:$0xff]
  %v1714 = vld [vmem:[%s8 + $0x60] sm:$0xff]
  %v1715 = vld [vmem:[%s8 + $0x68] sm:$0xff]
  %v1716 = vld [vmem:[%s8 + $0x70] sm:$0xff]
  %v1717 = vld [vmem:[%s8 + $0x78] sm:$0xff]
  %v1718 = vld [vmem:[%s9] sm:$0xff]
  %v1719 = vld [vmem:[%s9 + $0x8] sm:$0xff]
  %v1720 = vld [vmem:[%s9 + $0x10] sm:$0xff]
  %v1721 = vld [vmem:[%s9 + $0x18] sm:$0xff]
  %v1722 = vld [vmem:[%s9 + $0x20] sm:$0xff]
  %v1723 = vld [vmem:[%s9 + $0x28] sm:$0xff]
  %v1724 = vld [vmem:[%s9 + $0x30] sm:$0xff]
  %v1725 = vld [vmem:[%s9 + $0x38] sm:$0xff]
  %v1726 = vld [vmem:[%s9 + $0x40] sm:$0xff]
  %v1727 = vld [vmem:[%s9 + $0x48] sm:$0xff]
  %v1728 = vld [vmem:[%s9 + $0x50] sm:$0xff]
  %v1729 = vld [vmem:[%s9 + $0x58] sm:$0xff]
  %v1730 = vld [vmem:[%s9 + $0x60] sm:$0xff]
  %v1731 = vld [vmem:[%s9 + $0x68] sm:$0xff]
  %v1732 = vld [vmem:[%s9 + $0x70] sm:$0xff]
  %v1733 = vld [vmem:[%s9 + $0x78] sm:$0xff]
  %1734 = vmatpush.msra.mxu0 %v1733
  %1735 = vmatpush.msra.mxu0 %v1732
  %1736 = vmatpush.msra.mxu0 %v1731
  %1737 = vmatpush.msra.mxu0 %v1730
  %1738 = vmatpush.msra.mxu0 %v1729
  %1739 = vmatpush.msra.mxu0 %v1728
  %1740 = vmatpush.msra.mxu0 %v1727
  %1741 = vmatpush.msra.mxu0 %v1726
  %1742 = vmatpush.msra.mxu0 %v1725
  %1743 = vmatpush.msra.mxu0 %v1724
  %1744 = vmatpush.msra.mxu0 %v1723
  %1745 = vmatpush.msra.mxu0 %v1722
  %1746 = vmatpush.msra.mxu0 %v1721
  %1747 = vmatpush.msra.mxu0 %v1720
  %1748 = vmatpush.msra.mxu0 %v1719
  %1749 = vmatpush.msra.mxu0 %v1718
  %1750 = vmatmul.f32.gmra.mxu0 %v1701
  %v1751 = vpop.f32.mrf.mxu0
  %v1752 = vadd.f32 0.0, %v1751
  %1753 = vdwg.mxu0
  %1754 = vmatpush.msra.mxu0 %v1717
  %1755 = vmatpush.msra.mxu0 %v1716
  %1756 = vmatpush.msra.mxu0 %v1715
  %1757 = vmatpush.msra.mxu0 %v1714
  %1758 = vmatpush.msra.mxu0 %v1713
  %1759 = vmatpush.msra.mxu0 %v1712
  %1760 = vmatpush.msra.mxu0 %v1711
  %1761 = vmatpush.msra.mxu0 %v1710
  %1762 = vmatpush.msra.mxu0 %v1709
  %1763 = vmatpush.msra.mxu0 %v1708
  %1764 = vmatpush.msra.mxu0 %v1707
  %1765 = vmatpush.msra.mxu0 %v1706
  %1766 = vmatpush.msra.mxu0 %v1705
  %1767 = vmatpush.msra.mxu0 %v1704
  %1768 = vmatpush.msra.mxu0 %v1703
  %1769 = vmatpush.msra.mxu0 %v1702
  %1770 = vmatmul.f32.gmra.mxu0 %v1568
  %v1771 = vpop.f32.mrf.mxu0
  %v1772 = vadd.f32 %v1752, %v1771
  %1773 = vdwg.mxu0
  %v1774 = vld [vmem:[%s10] sm:$0x1]
  %v1776 = vperm.slane %v1774, 0
  %v1778 = vadd.f32 %v1772, %v1776
  %v1779 = vld [vmem:[%s11] sm:$0xff]
  %v1780 = vld [vmem:[%s11 + $0x8] sm:$0xff]
  %v1781 = vld [vmem:[%s11 + $0x10] sm:$0xff]
  %v1782 = vld [vmem:[%s11 + $0x18] sm:$0xff]
  %v1783 = vld [vmem:[%s11 + $0x20] sm:$0xff]
  %v1784 = vld [vmem:[%s11 + $0x28] sm:$0xff]
  %v1785 = vld [vmem:[%s11 + $0x30] sm:$0xff]
  %v1786 = vld [vmem:[%s11 + $0x38] sm:$0xff]
  %v1787 = vld [vmem:[%s12] sm:$0x1]
  %v1789 = vperm.slane %v1787, 0
  %vm1791 = vcmask 523264
  %v1793 = vsel %vm1791, %v1778, 0
  %1795 = vmatpush.msra.mxu0 0.0
  %1796 = vmatpush.msra.mxu0 0.0
  %1797 = vmatpush.msra.mxu0 0.0
  %1798 = vmatpush.msra.mxu0 0.0
  %1799 = vmatpush.msra.mxu0 0.0
  %1800 = vmatpush.msra.mxu0 0.0
  %1801 = vmatpush.msra.mxu0 0.0
  %1802 = vmatpush.msra.mxu0 0.0
  %1803 = vmatpush.msra.mxu0 %v1786
  %1804 = vmatpush.msra.mxu0 %v1785
  %1805 = vmatpush.msra.mxu0 %v1784
  %1806 = vmatpush.msra.mxu0 %v1783
  %1807 = vmatpush.msra.mxu0 %v1782
  %1808 = vmatpush.msra.mxu0 %v1781
  %1809 = vmatpush.msra.mxu0 %v1780
  %1810 = vmatpush.msra.mxu0 %v1779
  %1811 = vmatmul.f32.gmra.mxu0 %v1793
  %v1812 = vpop.f32.mrf.mxu0
  %v1813 = vadd.f32 %v1789, %v1812
  %1814 = vdwg.mxu0
  %v1815 = vld [vmem:[%s13] sm:$0xff]
  %v1816 = vld [vmem:[%s13 + $0x8] sm:$0xff]
  %v1817 = vld [vmem:[%s13 + $0x10] sm:$0xff]
  %v1818 = vld [vmem:[%s13 + $0x18] sm:$0xff]
  %v1819 = vld [vmem:[%s14] sm:$0x1]
  %v1821 = vperm.slane %v1819, 0
  %v1824 = vsel %vm138, %v1813, 0
  %1826 = vmatpush.msra.mxu0 0.0
  %1827 = vmatpush.msra.mxu0 0.0
  %1828 = vmatpush.msra.mxu0 0.0
  %1829 = vmatpush.msra.mxu0 0.0
  %1830 = vmatpush.msra.mxu0 0.0
  %1831 = vmatpush.msra.mxu0 0.0
  %1832 = vmatpush.msra.mxu0 0.0
  %1833 = vmatpush.msra.mxu0 0.0
  %1834 = vmatpush.msra.mxu0 0.0
  %1835 = vmatpush.msra.mxu0 0.0
  %1836 = vmatpush.msra.mxu0 0.0
  %1837 = vmatpush.msra.mxu0 0.0
  %1838 = vmatpush.msra.mxu0 %v1818
  %1839 = vmatpush.msra.mxu0 %v1817
  %1840 = vmatpush.msra.mxu0 %v1816
  %1841 = vmatpush.msra.mxu0 %v1815
  %1842 = vmatmul.f32.gmra.mxu0 %v1824
  %v1843 = vpop.f32.mrf.mxu0
  %v1844 = vadd.f32 %v1821, %v1843
  %1845 = vdwg.mxu0
  %1846 = vst [vmem:[%s15] sm:$0xff] %v1844
  // Predicated region
  $region62: #{lstm_model_forward.1} parent=0 // pred_check
    _
  $region63: #{lstm_model_forward.1} parent=0 // pred_check_branch
    %1848 = sbr.rel (0) target = $region65
  $region64: #{lstm_model_forward.1} parent=0 // pred_region
    _
  $region65: #{lstm_model_forward.1} parent=0 // pred_fallthru
    _
  // Predicated region
  $region66: #{lstm_model_forward.1} parent=0 // pred_check
    _
  $region67: #{lstm_model_forward.1} parent=0 // pred_check_branch
    %1850 = sbr.rel (0) target = $region69
  $region68: #{lstm_model_forward.1} parent=0 // pred_region
    _
  $region69: #{lstm_model_forward.1} parent=0 // pred_fallthru
    _

</llo_original>
